<compile_context>
chip_gen: v7x
topology: tpu7x:2x2x1
jax: 0.10.0
libtpu: 0.0.40
codegen_flags: <defaults>
</compile_context>

<pallas_src>
import functools
import math

import jax
import jax.numpy as jnp
from jax.experimental import pallas as pl
from jax.experimental.pallas import tpu as pltpu

EPS = 1e-5


def _attention_kernel(x_ref, a_ref, g_ref, be_ref, w_ref, b_ref, bp_ref, o_ref, *,
                      channels, eps):
    C = channels
    x = x_ref[0]                                   # (C, HW) f32, channel-major
    hw = x.shape[1]
    inv_hw = 1.0 / float(hw)

    # ---------------- GroupNorm (two-pass, biased variance, matches torch) ----------
    # Reduce over HW first, then pool channels within a group with a tiny (C,C)@(C,1).
    a = a_ref[...]                                                     # (C, C)
    mean_ch = jnp.sum(x, axis=1, keepdims=True) * inv_hw               # (C, 1)
    mean_g = jnp.dot(a, mean_ch, preferred_element_type=jnp.float32)   # (C, 1)
    xc = x - mean_g
    var_ch = jnp.sum(xc * xc, axis=1, keepdims=True) * inv_hw          # (C, 1)
    var_g = jnp.dot(a, var_ch, preferred_element_type=jnp.float32)     # (C, 1)
    h = xc * jax.lax.rsqrt(var_g + eps) * g_ref[...] + be_ref[...]     # (C, HW) f32

    # ---------------- fused qkv 1x1 conv (bf16 MXU, f32 accum, lane-dense N=HW) ------
    # w_ref already has 1/sqrt(C) folded into the q rows and W_proj folded into v rows.
    qkv = jnp.dot(w_ref[...], h.astype(jnp.bfloat16),
                  preferred_element_type=jnp.float32) + b_ref[...]     # (3C, HW) f32
    q = qkv[0:C, :]                                # (C, HW), pre-scaled
    k = qkv[C:2 * C, :]                            # (C, HW)
    v = qkv[2 * C:3 * C, :]                        # (C, HW), == W_proj @ v + W_proj @ b_v

    # ---------------- attention over the H*W tokens ---------------------------------
    q_t = jnp.transpose(q)                         # (HW, C), XLU transpose (no eye matmul)
    s = jnp.dot(q_t.astype(jnp.bfloat16), k.astype(jnp.bfloat16),
                preferred_element_type=jnp.float32)                    # (HW, HW) f32
    m = jnp.max(s, axis=1, keepdims=True)                              # (HW, 1)
    p = jnp.exp(s - m)                                                 # (HW, HW) f32
    p_bf = p.astype(jnp.bfloat16)
    v_bf = v.astype(jnp.bfloat16)

    # Deferred normalization: unnormalized PV, plus the row-sum denominator produced
    # directly lane-oriented as (1, HW) via a ones-row matmul (no relayout needed).
    out_un = jax.lax.dot_general(v_bf, p_bf, (((1,), (1,)), ((), ())),
                                 preferred_element_type=jnp.float32)   # (C, HW)
    ones_row = jnp.ones((1, hw), jnp.bfloat16)
    l_row = jax.lax.dot_general(ones_row, p_bf, (((1,), (1,)), ((), ())),
                                preferred_element_type=jnp.float32)    # (1, HW)
    out_c = out_un * pl.reciprocal(l_row, approx=True)                 # (C, HW)

    # ---------------- remaining proj bias + residual --------------------------------
    y = out_c + bp_ref[...]                                            # (C, HW)
    o_ref[0] = (x_ref[0] + y).astype(o_ref.dtype)


@functools.partial(jax.jit, static_argnames=("groups",))
def attention_block_pallas(x_nchw, params, *, groups):
    """x_nchw: (N, C, H, W) float32.  params as produced by init_params."""
    w_qkv, b_qkv, w_proj, b_proj, gamma, beta = params
    N, C, H, W = x_nchw.shape
    assert C % groups == 0, "GroupNorm requires channels % groups == 0"
    HW = H * W
    cg = C // groups
    scale = 1.0 / math.sqrt(C)
    hi = jax.lax.Precision.HIGHEST

    # Free contiguous reshape — no HBM transpose.
    x = x_nchw.reshape(N, C, HW)

    # Fold the attention scale into q and the output projection into v (exact: attention
    # is linear in v and softmax rows sum to 1).  Done once under jit, zero runtime cost.
    wq, wk, wv = w_qkv[:C], w_qkv[C:2 * C], w_qkv[2 * C:]
    bq, bk, bv = b_qkv[:C], b_qkv[C:2 * C], b_qkv[2 * C:]
    w_fused = jnp.concatenate(
        [wq * scale, wk, jnp.dot(w_proj, wv, precision=hi)], axis=0)       # (3C, C)
    b_fused = jnp.concatenate(
        [bq * scale, bk, jnp.dot(w_proj, bv, precision=hi)], axis=0)       # (3C, 1)
    w_fused_bf16 = w_fused.astype(jnp.bfloat16)

    # Group-averaging matrix: A[c, c'] = 1/cg if same group else 0 (hoisted constant).
    ci = jax.lax.broadcasted_iota(jnp.int32, (C, C), 0) // cg
    cj = jax.lax.broadcasted_iota(jnp.int32, (C, C), 1) // cg
    a_grp = (ci == cj).astype(jnp.float32) / float(cg)

    kernel = functools.partial(_attention_kernel, channels=C, eps=EPS)
    full = lambda b: (0, 0)

    out = pl.pallas_call(
        kernel,
        out_shape=jax.ShapeDtypeStruct((N, C, HW), jnp.float32),
        grid=(N,),
        in_specs=[
            pl.BlockSpec((1, C, HW), lambda b: (b, 0, 0)),   # x (one image per step)
            pl.BlockSpec((C, C), full),                      # group-averaging matrix
            pl.BlockSpec((C, 1), full),                      # gamma
            pl.BlockSpec((C, 1), full),                      # beta
            pl.BlockSpec((3 * C, C), full),                  # fused qkv weight (bf16)
            pl.BlockSpec((3 * C, 1), full),                  # fused qkv bias (f32)
            pl.BlockSpec((C, 1), full),                      # proj bias
        ],
        out_specs=pl.BlockSpec((1, C, HW), lambda b: (b, 0, 0)),
        compiler_params=pltpu.CompilerParams(
            dimension_semantics=("parallel",)),
    )(x, a_grp, gamma, beta, w_fused_bf16, b_fused, b_proj)

    return out.reshape(N, C, H, W)


def init_params(key, ch):
    """Deterministic synthetic parameters.  1x1 conv weights stored (out_ch, in_ch)."""
    k1, k2, k3, k4, k5, k6 = jax.random.split(key, 6)
    w_qkv = 0.1 * jax.random.normal(k1, (3 * ch, ch), jnp.float32)
    b_qkv = 0.05 * jax.random.normal(k2, (3 * ch, 1), jnp.float32)
    w_proj = 0.1 * jax.random.normal(k3, (ch, ch), jnp.float32)
    b_proj = 0.05 * jax.random.normal(k4, (ch, 1), jnp.float32)
    gamma = 1.0 + 0.1 * jax.random.normal(k5, (ch, 1), jnp.float32)
    beta = 0.1 * jax.random.normal(k6, (ch, 1), jnp.float32)
    return (w_qkv, b_qkv, w_proj, b_proj, gamma, beta)


def attention_block_ref(x, params, *, groups):
    """Pure-JAX reference mirroring the PyTorch AttentionBlock (unfused weights)."""
    w_qkv, b_qkv, w_proj, b_proj, gamma, beta = params
    N, C, H, W = x.shape
    HW = H * W
    hi = jax.lax.Precision.HIGHEST

    # GroupNorm(groups, C): normalize over (C//groups, H, W), biased variance.
    xg = x.reshape(N, groups, C // groups, HW)
    mean = xg.mean(axis=(2, 3), keepdims=True)
    var = jnp.mean((xg - mean) ** 2, axis=(2, 3), keepdims=True)
    h = ((xg - mean) * jax.lax.rsqrt(var + EPS)).reshape(N, C, HW)
    h = h * gamma.reshape(1, C, 1) + beta.reshape(1, C, 1)

    # 1x1 conv to_qkv, chunk along channels.
    qkv = jnp.einsum("oc,nci->noi", w_qkv, h, precision=hi) + b_qkv.reshape(1, 3 * C, 1)
    q, k, v = qkv[:, :C], qkv[:, C:2 * C], qkv[:, 2 * C:]

    qt = jnp.transpose(q, (0, 2, 1))                 # (N, HW, C)
    vt = jnp.transpose(v, (0, 2, 1))                 # (N, HW, C)
    scores = jnp.einsum("nic,ncj->nij", qt, k, precision=hi) / math.sqrt(C)
    attn = jax.nn.softmax(scores, axis=-1)
    out = jnp.einsum("nij,njc->nic", attn, vt, precision=hi)   # (N, HW, C)
    out_c = jnp.transpose(out, (0, 2, 1))                       # (N, C, HW)

    y = jnp.einsum("oc,nci->noi", w_proj, out_c, precision=hi) + b_proj.reshape(1, C, 1)
    return x + y.reshape(N, C, H, W)


if __name__ == "__main__":
    N, C, H, W = 2, 32, 16, 16
    GROUPS = 16                                     # matches nn.GroupNorm(16, ch)

    key = jax.random.PRNGKey(0)
    kx, kp = jax.random.split(key)
    x = jax.random.normal(kx, (N, C, H, W), jnp.float32)   # NCHW, like PyTorch
    params = init_params(kp, C)

    out = jax.block_until_ready(attention_block_pallas(x, params, groups=GROUPS))
    ref = jax.block_until_ready(attention_block_ref(x, params, groups=GROUPS))

    max_err = float(jnp.max(jnp.abs(out - ref)))
    assert out.shape == (N, C, H, W)
    assert max_err < 1e-2, f"mismatch vs reference: max abs err = {max_err}"

    print("KERNEL_OK")
</pallas_src>

<mosaic_0001>
module attributes {stable_mosaic.version = 11 : i64} {
  func.func @_attention_kernel(%arg0: i32, %arg1: memref<1x32x256xf32, #tpu.memory_space<vmem>>, %arg2: memref<32x32xf32, #tpu.memory_space<vmem>>, %arg3: memref<32x1xf32, #tpu.memory_space<vmem>>, %arg4: memref<32x1xf32, #tpu.memory_space<vmem>>, %arg5: memref<96x32xbf16, #tpu.memory_space<vmem>>, %arg6: memref<96x1xf32, #tpu.memory_space<vmem>>, %arg7: memref<32x1xf32, #tpu.memory_space<vmem>>, %arg8: memref<1x32x256xf32, #tpu.memory_space<vmem>>) attributes {dimension_semantics = [#tpu.dimension_semantics<parallel>], iteration_bounds = array<i64: 2>, scalar_prefetch = 0 : i64, scratch_operands = 0 : i64, tpu.core_type = #tpu.core_type<tc>, window_params = [{transform_indices = @transform_0, window_bounds = array<i64: 1, 32, 256>}, {pipeline_mode = #tpu.pipeline_mode<synchronous>, transform_indices = @transform_1, window_bounds = array<i64: 32, 32>}, {pipeline_mode = #tpu.pipeline_mode<synchronous>, transform_indices = @transform_2, window_bounds = array<i64: 32, 1>}, {pipeline_mode = #tpu.pipeline_mode<synchronous>, transform_indices = @transform_3, window_bounds = array<i64: 32, 1>}, {pipeline_mode = #tpu.pipeline_mode<synchronous>, transform_indices = @transform_4, window_bounds = array<i64: 96, 32>}, {pipeline_mode = #tpu.pipeline_mode<synchronous>, transform_indices = @transform_5, window_bounds = array<i64: 96, 1>}, {pipeline_mode = #tpu.pipeline_mode<synchronous>, transform_indices = @transform_6, window_bounds = array<i64: 32, 1>}, {transform_indices = @transform_7, window_bounds = array<i64: 1, 32, 256>}]} {
    %c0 = arith.constant 0 : index
    %c0_0 = arith.constant 0 : index
    %c0_1 = arith.constant 0 : index
    %0 = vector.load %arg1[%c0, %c0_0, %c0_1] : memref<1x32x256xf32, #tpu.memory_space<vmem>>, vector<1x32x256xf32>
    %1 = vector.shape_cast %0 : vector<1x32x256xf32> to vector<32x256xf32>
    %c0_2 = arith.constant 0 : index
    %c0_3 = arith.constant 0 : index
    %2 = vector.load %arg2[%c0_2, %c0_3] : memref<32x32xf32, #tpu.memory_space<vmem>>, vector<32x32xf32>
    %cst = arith.constant dense<0.000000e+00> : vector<32xf32>
    %3 = vector.multi_reduction <add>, %1, %cst [1] : vector<32x256xf32> to vector<32xf32>
    %4 = vector.shape_cast %3 : vector<32xf32> to vector<32x1xf32>
    %cst_4 = arith.constant 3.906250e-03 : f32
    %5 = vector.broadcast %cst_4 : f32 to vector<32x1xf32>
    %6 = arith.mulf %4, %5 : vector<32x1xf32>
    %cst_5 = arith.constant dense<0.000000e+00> : vector<32x1xf32>
    %7 = tpu.matmul %2, %6, %cst_5 {dimension_numbers = #tpu.dot_dimension_numbers<[1], [0], [0], [1], [0, 0, 1, 1], [], []>} : vector<32x32xf32>, vector<32x1xf32>, vector<32x1xf32> -> vector<32x1xf32>
    %8 = vector.broadcast %7 : vector<32x1xf32> to vector<32x256xf32>
    %9 = arith.subf %1, %8 : vector<32x256xf32>
    %10 = arith.mulf %9, %9 : vector<32x256xf32>
    %cst_6 = arith.constant dense<0.000000e+00> : vector<32xf32>
    %11 = vector.multi_reduction <add>, %10, %cst_6 [1] : vector<32x256xf32> to vector<32xf32>
    %12 = vector.shape_cast %11 : vector<32xf32> to vector<32x1xf32>
    %cst_7 = arith.constant 3.906250e-03 : f32
    %13 = vector.broadcast %cst_7 : f32 to vector<32x1xf32>
    %14 = arith.mulf %12, %13 : vector<32x1xf32>
    %cst_8 = arith.constant dense<0.000000e+00> : vector<32x1xf32>
    %15 = tpu.matmul %2, %14, %cst_8 {dimension_numbers = #tpu.dot_dimension_numbers<[1], [0], [0], [1], [0, 0, 1, 1], [], []>} : vector<32x32xf32>, vector<32x1xf32>, vector<32x1xf32> -> vector<32x1xf32>
    %cst_9 = arith.constant 9.99999974E-6 : f32
    %16 = vector.broadcast %cst_9 : f32 to vector<32x1xf32>
    %17 = arith.addf %15, %16 : vector<32x1xf32>
    %18 = math.rsqrt %17 : vector<32x1xf32>
    %19 = vector.broadcast %18 : vector<32x1xf32> to vector<32x256xf32>
    %20 = arith.mulf %9, %19 : vector<32x256xf32>
    %c0_10 = arith.constant 0 : index
    %c0_11 = arith.constant 0 : index
    %21 = vector.load %arg3[%c0_10, %c0_11] : memref<32x1xf32, #tpu.memory_space<vmem>>, vector<32x1xf32>
    %22 = vector.broadcast %21 : vector<32x1xf32> to vector<32x256xf32>
    %23 = arith.mulf %20, %22 : vector<32x256xf32>
    %c0_12 = arith.constant 0 : index
    %c0_13 = arith.constant 0 : index
    %24 = vector.load %arg4[%c0_12, %c0_13] : memref<32x1xf32, #tpu.memory_space<vmem>>, vector<32x1xf32>
    %25 = vector.broadcast %24 : vector<32x1xf32> to vector<32x256xf32>
    %26 = arith.addf %23, %25 : vector<32x256xf32>
    %c0_14 = arith.constant 0 : index
    %c0_15 = arith.constant 0 : index
    %27 = vector.load %arg5[%c0_14, %c0_15] : memref<96x32xbf16, #tpu.memory_space<vmem>>, vector<96x32xbf16>
    %28 = arith.truncf %26 : vector<32x256xf32> to vector<32x256xbf16>
    %cst_16 = arith.constant dense<0.000000e+00> : vector<96x256xf32>
    %29 = tpu.matmul %27, %28, %cst_16 {dimension_numbers = #tpu.dot_dimension_numbers<[1], [0], [0], [1], [0, 0, 1, 1], [], []>} : vector<96x32xbf16>, vector<32x256xbf16>, vector<96x256xf32> -> vector<96x256xf32>
    %c0_17 = arith.constant 0 : index
    %c0_18 = arith.constant 0 : index
    %30 = vector.load %arg6[%c0_17, %c0_18] : memref<96x1xf32, #tpu.memory_space<vmem>>, vector<96x1xf32>
    %31 = vector.broadcast %30 : vector<96x1xf32> to vector<96x256xf32>
    %32 = arith.addf %29, %31 : vector<96x256xf32>
    %33 = vector.extract_strided_slice %32 {offsets = [0, 0], sizes = [32, 256], strides = [1, 1]} : vector<96x256xf32> to vector<32x256xf32>
    %34 = vector.extract_strided_slice %32 {offsets = [32, 0], sizes = [32, 256], strides = [1, 1]} : vector<96x256xf32> to vector<32x256xf32>
    %35 = vector.extract_strided_slice %32 {offsets = [64, 0], sizes = [32, 256], strides = [1, 1]} : vector<96x256xf32> to vector<32x256xf32>
    %36 = tpu.transpose %33, [1, 0] : vector<32x256xf32> -> vector<256x32xf32>
    %37 = arith.truncf %36 : vector<256x32xf32> to vector<256x32xbf16>
    %38 = arith.truncf %34 : vector<32x256xf32> to vector<32x256xbf16>
    %cst_19 = arith.constant dense<0.000000e+00> : vector<256x256xf32>
    %39 = tpu.matmul %37, %38, %cst_19 {dimension_numbers = #tpu.dot_dimension_numbers<[1], [0], [0], [1], [0, 0, 1, 1], [], []>} : vector<256x32xbf16>, vector<32x256xbf16>, vector<256x256xf32> -> vector<256x256xf32>
    %cst_20 = arith.constant dense<0xFF800000> : vector<256xf32>
    %40 = vector.multi_reduction <maximumf>, %39, %cst_20 [1] : vector<256x256xf32> to vector<256xf32>
    %41 = vector.shape_cast %40 : vector<256xf32> to vector<256x1xf32>
    %42 = vector.broadcast %41 : vector<256x1xf32> to vector<256x256xf32>
    %43 = arith.subf %39, %42 : vector<256x256xf32>
    %44 = math.exp %43 : vector<256x256xf32>
    %45 = arith.truncf %44 : vector<256x256xf32> to vector<256x256xbf16>
    %46 = arith.truncf %35 : vector<32x256xf32> to vector<32x256xbf16>
    %cst_21 = arith.constant dense<0.000000e+00> : vector<32x256xf32>
    %47 = tpu.matmul %46, %45, %cst_21 {dimension_numbers = #tpu.dot_dimension_numbers<[1], [1], [0], [0], [0, 0, 1, 0], [], []>} : vector<32x256xbf16>, vector<256x256xbf16>, vector<32x256xf32> -> vector<32x256xf32>
    %cst_22 = arith.constant 1.000000e+00 : bf16
    %48 = vector.broadcast %cst_22 : bf16 to vector<1x256xbf16>
    %cst_23 = arith.constant dense<0.000000e+00> : vector<1x256xf32>
    %49 = tpu.matmul %48, %45, %cst_23 {dimension_numbers = #tpu.dot_dimension_numbers<[1], [1], [0], [0], [0, 0, 1, 0], [], []>} : vector<1x256xbf16>, vector<256x256xbf16>, vector<1x256xf32> -> vector<1x256xf32>
    %50 = tpu.reciprocal %49 {approx = true} : vector<1x256xf32> -> vector<1x256xf32>
    %51 = vector.broadcast %50 : vector<1x256xf32> to vector<32x256xf32>
    %52 = arith.mulf %47, %51 : vector<32x256xf32>
    %c0_24 = arith.constant 0 : index
    %c0_25 = arith.constant 0 : index
    %53 = vector.load %arg7[%c0_24, %c0_25] : memref<32x1xf32, #tpu.memory_space<vmem>>, vector<32x1xf32>
    %54 = vector.broadcast %53 : vector<32x1xf32> to vector<32x256xf32>
    %55 = arith.addf %52, %54 : vector<32x256xf32>
    %c0_26 = arith.constant 0 : index
    %c0_27 = arith.constant 0 : index
    %c0_28 = arith.constant 0 : index
    %56 = vector.load %arg1[%c0_26, %c0_27, %c0_28] : memref<1x32x256xf32, #tpu.memory_space<vmem>>, vector<1x32x256xf32>
    %57 = vector.shape_cast %56 : vector<1x32x256xf32> to vector<32x256xf32>
    %58 = arith.addf %57, %55 : vector<32x256xf32>
    %c0_29 = arith.constant 0 : index
    %c0_30 = arith.constant 0 : index
    %c0_31 = arith.constant 0 : index
    %59 = vector.load %arg8[%c0_29, %c0_30, %c0_31] : memref<1x32x256xf32, #tpu.memory_space<vmem>>, vector<1x32x256xf32>
    %60 = vector.shape_cast %59 : vector<1x32x256xf32> to vector<32x256xf32>
    %61 = vector.shape_cast %58 : vector<32x256xf32> to vector<1x32x256xf32>
    tpu.vector_store %arg8[%c0_29, %c0_30, %c0_31], %61 {strides = array<i32>} : memref<1x32x256xf32, #tpu.memory_space<vmem>>, vector<1x32x256xf32>,
    return
  }
  func.func @transform_0(%arg0: i32) -> (i32, i32, i32) {
    %c0_i32 = arith.constant 0 : i32
    %c0_i32_0 = arith.constant 0 : i32
    %c0_i32_1 = arith.constant 0 : i32
    return %arg0, %c0_i32, %c0_i32_0 : i32, i32, i32
  }
  func.func @transform_1(%arg0: i32) -> (i32, i32) {
    %c0_i32 = arith.constant 0 : i32
    %c0_i32_0 = arith.constant 0 : i32
    %c0_i32_1 = arith.constant 0 : i32
    return %c0_i32, %c0_i32_0 : i32, i32
  }
  func.func @transform_2(%arg0: i32) -> (i32, i32) {
    %c0_i32 = arith.constant 0 : i32
    %c0_i32_0 = arith.constant 0 : i32
    %c0_i32_1 = arith.constant 0 : i32
    return %c0_i32, %c0_i32_0 : i32, i32
  }
  func.func @transform_3(%arg0: i32) -> (i32, i32) {
    %c0_i32 = arith.constant 0 : i32
    %c0_i32_0 = arith.constant 0 : i32
    %c0_i32_1 = arith.constant 0 : i32
    return %c0_i32, %c0_i32_0 : i32, i32
  }
  func.func @transform_4(%arg0: i32) -> (i32, i32) {
    %c0_i32 = arith.constant 0 : i32
    %c0_i32_0 = arith.constant 0 : i32
    %c0_i32_1 = arith.constant 0 : i32
    return %c0_i32, %c0_i32_0 : i32, i32
  }
  func.func @transform_5(%arg0: i32) -> (i32, i32) {
    %c0_i32 = arith.constant 0 : i32
    %c0_i32_0 = arith.constant 0 : i32
    %c0_i32_1 = arith.constant 0 : i32
    return %c0_i32, %c0_i32_0 : i32, i32
  }
  func.func @transform_6(%arg0: i32) -> (i32, i32) {
    %c0_i32 = arith.constant 0 : i32
    %c0_i32_0 = arith.constant 0 : i32
    %c0_i32_1 = arith.constant 0 : i32
    return %c0_i32, %c0_i32_0 : i32, i32
  }
  func.func @transform_7(%arg0: i32) -> (i32, i32, i32) {
    %c0_i32 = arith.constant 0 : i32
    %c0_i32_0 = arith.constant 0 : i32
    %c0_i32_1 = arith.constant 0 : i32
    return %arg0, %c0_i32, %c0_i32_0 : i32, i32, i32
  }
}

</mosaic_0001>

<llo_original>
// kernel: attention_block_pallas.1
$region0: #{attention_block_pallas.1}
  #allocation0 [shape = 'u32[]', space=smem, size = 0x4, offset = 0x4, fixed_abs, tag = 'smem constant byte address 0x4 - core index']
  #allocation1 [shape = 'u32[144,128]{1,0:T(1,128)}', space=vmem, size = 0x12000, scoped, tag = 'internal scratch']
  %s0 = inlined_call_operand.vmem [shape: f32[2,32,256], index: 0, kind: input, shape index: {}]
  %s1 = inlined_call_operand.vmem [shape: f32[32,32], index: 1, kind: input, shape index: {}]
  %s2 = inlined_call_operand.vmem [shape: f32[32,1], index: 2, kind: input, shape index: {}]
  %s3 = inlined_call_operand.vmem [shape: f32[32,1], index: 3, kind: input, shape index: {}]
  %s4 = inlined_call_operand.vmem [shape: bf16[96,32], index: 4, kind: input, shape index: {}]
  %s5 = inlined_call_operand.vmem [shape: f32[96,1], index: 5, kind: input, shape index: {}]
  %s6 = inlined_call_operand.vmem [shape: f32[32,1], index: 6, kind: input, shape index: {}]
  %s7 = inlined_call_operand.vmem [shape: f32[2,32,256], index: 7, kind: output, shape index: {}]
  %s8 = sld [smem:[#allocation0]]
  $region61: #{attention_block_pallas.1} parent=0
    _
  %s10 = ssub.s32 1, %s8
  %s11 = scalar_select 0, %s10, %s8
  loop: start=0, step=1, limit=4
  $region2: #{attention_block_pallas.1} parent=0 // loop_pre_header
    _
  $region3: #{attention_block_pallas.1} parent=0 // loop_header
    %s13 = sphi 0, %s17
    %p14 = scmp.ge.s32.totalorder %s13, 4
    %s23 = sphi 0, %s25
    %s26 = sphi 0, %s23
    %s27 = sphi 0, %s26
    %s43 = sphi 0, %s27
    %s47 = sphi 0, %s47
    %s49 = sphi 0, %s47
    %s50 = sphi 0, %s49
    %s64 = sphi 0, %s50
    %s68 = sphi 0, %s68
    %s70 = sphi 0, %s68
    %s71 = sphi 0, %s70
    %s85 = sphi 0, %s71
    %s89 = sphi 0, %s89
    %s91 = sphi 0, %s89
    %s92 = sphi 0, %s91
    %s106 = sphi 0, %s92
    %s110 = sphi 0, %s110
    %s112 = sphi 0, %s110
    %s113 = sphi 0, %s112
    %s127 = sphi 0, %s113
    %s131 = sphi 0, %s131
    %s133 = sphi 0, %s131
    %s134 = sphi 0, %s133
    %s148 = sphi 0, %s134
    %s152 = sphi 0, %s152
    %s154 = sphi 0, %s152
    %s155 = sphi 0, %s154
    %s169 = sphi 0, %s155
    %s175 = sphi 0, %s177
    %s178 = sphi 0, %s175
    %s179 = sphi 0, %s178
    %s195 = sphi 0, %s179
  $region4: #{attention_block_pallas.1} parent=0 // loop_header_branch
    %16 = sbr.rel (%p14) target = $region8
  $region5: #{attention_block_pallas.1} parent=0 // loop_body
    %s18 = ssub.s32 %s13, 1
    %s19 = ssub.s32 %s13, 2
    %s20 = sadd.s32 %s13, 1
    %s21 = ssub.s32 %s13, %s20
    %p22 = scmp.eq.s32.totalorder %s21, 0
    %s24 = sadd.s32 %s23, 1
    %s25 = scalar_select %p22, %s23, %s24
    %p28 = pneg %p22
    %p29 = scmp.eq.s32.totalorder %s13, 1
    %p30 = por %p28, %p29
    %p31 = scmp.ne.s32.totalorder %s23, %s26
    %p32 = scmp.eq.s32.totalorder %s13, 0
    %p33 = por %p31, %p32
    %p34 = scmp.ne.s32.totalorder %s23, %s26
    %p35 = scmp.eq.s32.totalorder %s18, 1
    %p36 = por %p34, %p35
    %p37 = scmp.ne.s32.totalorder %s26, %s27
    %p38 = scmp.eq.s32.totalorder %s18, 0
    %p39 = por %p37, %p38
    %p40 = scmp.ne.s32.totalorder %s26, %s27
    %p41 = scmp.eq.s32.totalorder %s19, 1
    %p42 = por %p40, %p41
    %p44 = scmp.ne.s32.totalorder %s27, %s43
    %p45 = scmp.eq.s32.totalorder %s19, 0
    %p46 = por %p44, %p45
    %s48 = sadd.s32 %s47, 1
    %p51 = scmp.eq.s32.totalorder %s13, 1
    %p52 = scmp.ne.s32.totalorder %s47, %s49
    %p53 = scmp.eq.s32.totalorder %s13, 0
    %p54 = por %p52, %p53
    %p55 = scmp.ne.s32.totalorder %s47, %s49
    %p56 = scmp.eq.s32.totalorder %s18, 1
    %p57 = por %p55, %p56
    %p58 = scmp.ne.s32.totalorder %s49, %s50
    %p59 = scmp.eq.s32.totalorder %s18, 0
    %p60 = por %p58, %p59
    %p61 = scmp.ne.s32.totalorder %s49, %s50
    %p62 = scmp.eq.s32.totalorder %s19, 1
    %p63 = por %p61, %p62
    %p65 = scmp.ne.s32.totalorder %s50, %s64
    %p66 = scmp.eq.s32.totalorder %s19, 0
    %p67 = por %p65, %p66
    %s69 = sadd.s32 %s68, 1
    %p72 = scmp.eq.s32.totalorder %s13, 1
    %p73 = scmp.ne.s32.totalorder %s68, %s70
    %p74 = scmp.eq.s32.totalorder %s13, 0
    %p75 = por %p73, %p74
    %p76 = scmp.ne.s32.totalorder %s68, %s70
    %p77 = scmp.eq.s32.totalorder %s18, 1
    %p78 = por %p76, %p77
    %p79 = scmp.ne.s32.totalorder %s70, %s71
    %p80 = scmp.eq.s32.totalorder %s18, 0
    %p81 = por %p79, %p80
    %p82 = scmp.ne.s32.totalorder %s70, %s71
    %p83 = scmp.eq.s32.totalorder %s19, 1
    %p84 = por %p82, %p83
    %p86 = scmp.ne.s32.totalorder %s71, %s85
    %p87 = scmp.eq.s32.totalorder %s19, 0
    %p88 = por %p86, %p87
    %s90 = sadd.s32 %s89, 1
    %p93 = scmp.eq.s32.totalorder %s13, 1
    %p94 = scmp.ne.s32.totalorder %s89, %s91
    %p95 = scmp.eq.s32.totalorder %s13, 0
    %p96 = por %p94, %p95
    %p97 = scmp.ne.s32.totalorder %s89, %s91
    %p98 = scmp.eq.s32.totalorder %s18, 1
    %p99 = por %p97, %p98
    %p100 = scmp.ne.s32.totalorder %s91, %s92
    %p101 = scmp.eq.s32.totalorder %s18, 0
    %p102 = por %p100, %p101
    %p103 = scmp.ne.s32.totalorder %s91, %s92
    %p104 = scmp.eq.s32.totalorder %s19, 1
    %p105 = por %p103, %p104
    %p107 = scmp.ne.s32.totalorder %s92, %s106
    %p108 = scmp.eq.s32.totalorder %s19, 0
    %p109 = por %p107, %p108
    %s111 = sadd.s32 %s110, 1
    %p114 = scmp.eq.s32.totalorder %s13, 1
    %p115 = scmp.ne.s32.totalorder %s110, %s112
    %p116 = scmp.eq.s32.totalorder %s13, 0
    %p117 = por %p115, %p116
    %p118 = scmp.ne.s32.totalorder %s110, %s112
    %p119 = scmp.eq.s32.totalorder %s18, 1
    %p120 = por %p118, %p119
    %p121 = scmp.ne.s32.totalorder %s112, %s113
    %p122 = scmp.eq.s32.totalorder %s18, 0
    %p123 = por %p121, %p122
    %p124 = scmp.ne.s32.totalorder %s112, %s113
    %p125 = scmp.eq.s32.totalorder %s19, 1
    %p126 = por %p124, %p125
    %p128 = scmp.ne.s32.totalorder %s113, %s127
    %p129 = scmp.eq.s32.totalorder %s19, 0
    %p130 = por %p128, %p129
    %s132 = sadd.s32 %s131, 1
    %p135 = scmp.eq.s32.totalorder %s13, 1
    %p136 = scmp.ne.s32.totalorder %s131, %s133
    %p137 = scmp.eq.s32.totalorder %s13, 0
    %p138 = por %p136, %p137
    %p139 = scmp.ne.s32.totalorder %s131, %s133
    %p140 = scmp.eq.s32.totalorder %s18, 1
    %p141 = por %p139, %p140
    %p142 = scmp.ne.s32.totalorder %s133, %s134
    %p143 = scmp.eq.s32.totalorder %s18, 0
    %p144 = por %p142, %p143
    %p145 = scmp.ne.s32.totalorder %s133, %s134
    %p146 = scmp.eq.s32.totalorder %s19, 1
    %p147 = por %p145, %p146
    %p149 = scmp.ne.s32.totalorder %s134, %s148
    %p150 = scmp.eq.s32.totalorder %s19, 0
    %p151 = por %p149, %p150
    %s153 = sadd.s32 %s152, 1
    %p156 = scmp.eq.s32.totalorder %s13, 1
    %p157 = scmp.ne.s32.totalorder %s152, %s154
    %p158 = scmp.eq.s32.totalorder %s13, 0
    %p159 = por %p157, %p158
    %p160 = scmp.ne.s32.totalorder %s152, %s154
    %p161 = scmp.eq.s32.totalorder %s18, 1
    %p162 = por %p160, %p161
    %p163 = scmp.ne.s32.totalorder %s154, %s155
    %p164 = scmp.eq.s32.totalorder %s18, 0
    %p165 = por %p163, %p164
    %p166 = scmp.ne.s32.totalorder %s154, %s155
    %p167 = scmp.eq.s32.totalorder %s19, 1
    %p168 = por %p166, %p167
    %p170 = scmp.ne.s32.totalorder %s155, %s169
    %p171 = scmp.eq.s32.totalorder %s19, 0
    %p172 = por %p170, %p171
    %s173 = ssub.s32 %s13, %s20
    %p174 = scmp.eq.s32.totalorder %s173, 0
    %s176 = sadd.s32 %s175, 1
    %s177 = scalar_select %p174, %s175, %s176
    %p180 = pneg %p174
    %p181 = scmp.eq.s32.totalorder %s13, 1
    %p182 = por %p180, %p181
    %p183 = scmp.ne.s32.totalorder %s175, %s178
    %p184 = scmp.eq.s32.totalorder %s13, 0
    %p185 = por %p183, %p184
    %p186 = scmp.ne.s32.totalorder %s175, %s178
    %p187 = scmp.eq.s32.totalorder %s18, 1
    %p188 = por %p186, %p187
    %p189 = scmp.ne.s32.totalorder %s178, %s179
    %p190 = scmp.eq.s32.totalorder %s18, 0
    %p191 = por %p189, %p190
    %p192 = scmp.ne.s32.totalorder %s178, %s179
    %p193 = scmp.eq.s32.totalorder %s19, 1
    %p194 = por %p192, %p193
    %p196 = scmp.ne.s32.totalorder %s179, %s195
    %p197 = scmp.eq.s32.totalorder %s19, 0
    %p198 = por %p196, %p197
    %p199 = scmp.le.s32.totalorder 1, %s13
    %p200 = scmp.lt.s32.totalorder %s13, 3
    %p201 = pnand %p199, %p200
    %p202 = pneg %p201
    // Predicated region
    $region9: #{attention_block_pallas.1} parent=5 // pred_check
      _
    $region10: #{attention_block_pallas.1} parent=5 // pred_check_branch
      %204 = sbr.rel (%p201) target = $region12
    $region11: #{attention_block_pallas.1} parent=5 // pred_region
      %s205 = ssub.s32 %s13, 1
      // Predicated region
      $region13: #{attention_block_pallas.1} parent=11 // pred_check
        %p206 = pneg %p60
      $region14: #{attention_block_pallas.1} parent=11 // pred_check_branch
        %208 = sbr.rel (%p206) target = $region16
      $region15: #{attention_block_pallas.1} parent=11 // pred_region
        _
      $region16: #{attention_block_pallas.1} parent=11 // pred_fallthru
        _
      // Predicated region
      $region17: #{attention_block_pallas.1} parent=11 // pred_check
        %p209 = pneg %p81
      $region18: #{attention_block_pallas.1} parent=11 // pred_check_branch
        %211 = sbr.rel (%p209) target = $region20
      $region19: #{attention_block_pallas.1} parent=11 // pred_region
        _
      $region20: #{attention_block_pallas.1} parent=11 // pred_fallthru
        _
      // Predicated region
      $region21: #{attention_block_pallas.1} parent=11 // pred_check
        %p212 = pneg %p102
      $region22: #{attention_block_pallas.1} parent=11 // pred_check_branch
        %214 = sbr.rel (%p212) target = $region24
      $region23: #{attention_block_pallas.1} parent=11 // pred_region
        _
      $region24: #{attention_block_pallas.1} parent=11 // pred_fallthru
        _
      // Predicated region
      $region25: #{attention_block_pallas.1} parent=11 // pred_check
        %p215 = pneg %p123
      $region26: #{attention_block_pallas.1} parent=11 // pred_check_branch
        %217 = sbr.rel (%p215) target = $region28
      $region27: #{attention_block_pallas.1} parent=11 // pred_region
        _
      $region28: #{attention_block_pallas.1} parent=11 // pred_fallthru
        _
      // Predicated region
      $region29: #{attention_block_pallas.1} parent=11 // pred_check
        %p218 = pneg %p144
      $region30: #{attention_block_pallas.1} parent=11 // pred_check_branch
        %220 = sbr.rel (%p218) target = $region32
      $region31: #{attention_block_pallas.1} parent=11 // pred_region
        _
      $region32: #{attention_block_pallas.1} parent=11 // pred_fallthru
        _
      // Predicated region
      $region33: #{attention_block_pallas.1} parent=11 // pred_check
        %p221 = pneg %p165
      $region34: #{attention_block_pallas.1} parent=11 // pred_check_branch
        %223 = sbr.rel (%p221) target = $region36
      $region35: #{attention_block_pallas.1} parent=11 // pred_region
        _
      $region36: #{attention_block_pallas.1} parent=11 // pred_fallthru
        _
    $region12: #{attention_block_pallas.1} parent=5 // pred_fallthru
      _
    %p224 = scmp.lt.s32.totalorder %s13, 2
    // Predicated region
    $region37: #{attention_block_pallas.1} parent=5 // pred_check
      %p225 = pneg %p224
    $region38: #{attention_block_pallas.1} parent=5 // pred_check_branch
      %227 = sbr.rel (%p225) target = $region40
    $region39: #{attention_block_pallas.1} parent=5 // pred_region
      // Predicated region
      $region41: #{attention_block_pallas.1} parent=39 // pred_check
        %p228 = pneg %p33
      $region42: #{attention_block_pallas.1} parent=39 // pred_check_branch
        %230 = sbr.rel (%p228) target = $region44
      $region43: #{attention_block_pallas.1} parent=39 // pred_region
        %p231 = scmp.lt.s32.totalorder %s13, 1
        %s232 = scalar_select %p231, %s13, 1
        %s233 = smul.addr %s232, 8
        %s234 = smul.addr %s233, 8
        %s235 = scalar_lea.vmem %s0, %s234
      $region44: #{attention_block_pallas.1} parent=39 // pred_fallthru
        _
    $region40: #{attention_block_pallas.1} parent=5 // pred_fallthru
      _
    %p236 = scmp.le.s32.totalorder 1, %s13
    %p237 = scmp.lt.s32.totalorder %s13, 3
    %p238 = pnand %p236, %p237
    %p239 = pneg %p238
    // Predicated region
    $region45: #{attention_block_pallas.1} parent=5 // pred_check
      _
    $region46: #{attention_block_pallas.1} parent=5 // pred_check_branch
      %241 = sbr.rel (%p238) target = $region48
    $region47: #{attention_block_pallas.1} parent=5 // pred_region
      %s242 = ssub.s32 %s13, 1
      %p243 = scmp.lt.s32.totalorder %s18, 1
      %s244 = scalar_select %p243, %s18, 1
      %s245 = smul.addr %s244, 8
      %s246 = smul.addr %s245, 8
      %s247 = scalar_lea.vmem %s0, %s246
      %p248 = pneg %p39
      %p249 = pneg %p36
      %p250 = pneg %p60
      %p251 = pneg %p57
      %p252 = pneg %p81
      %p253 = pneg %p78
      %p254 = pneg %p102
      %p255 = pneg %p99
      %p256 = pneg %p123
      %p257 = pneg %p120
      %p258 = pneg %p144
      %p259 = pneg %p141
      %p260 = pneg %p165
      %p261 = pneg %p162
      %p262 = pneg %p191
      %p263 = pneg %p188
      %p264 = scmp.lt.s32.totalorder %s18, 1
      %s265 = scalar_select %p264, %s18, 1
      %s266 = smul.addr %s265, 8
      %s267 = smul.addr %s266, 8
      %s268 = scalar_lea.vmem %s7, %s267
      %p269 = scmp.lt.s32.totalorder %s18, 1
      %s270 = scalar_select %p269, %s18, 1
      %s271 = smul.addr %s270, 8
      %s272 = smul.addr %s271, 8
      %s273 = scalar_lea.vmem %s0, %s272
      %p274 = scmp.lt.s32.totalorder %s18, 1
      %s275 = scalar_select %p274, %s18, 1
      %s276 = smul.addr %s275, 8
      %s277 = smul.addr %s276, 8
      %s278 = scalar_lea.vmem %s7, %s277
      %v281 = vld [vmem:[%s273] sm:$0xff]
      %v282 = vld [vmem:[%s273 + $0x8] sm:$0xff]
      %v283 = vld [vmem:[%s273 + $0x10] sm:$0xff]
      %v284 = vld [vmem:[%s273 + $0x18] sm:$0xff]
      %v285 = vld [vmem:[%s273 + $0x20] sm:$0xff]
      %v286 = vld [vmem:[%s273 + $0x28] sm:$0xff]
      %v287 = vld [vmem:[%s273 + $0x30] sm:$0xff]
      %v288 = vld [vmem:[%s273 + $0x38] sm:$0xff]
      %v289 = vld [vmem:[%s1] sm:$0xff]
      %v290 = vld [vmem:[%s1 + $0x8] sm:$0xff]
      %v291 = vld [vmem:[%s1 + $0x10] sm:$0xff]
      %v292 = vld [vmem:[%s1 + $0x18] sm:$0xff]
      %v293 = vadd.f32 %v281, %v282
      %294 = vadd.xlane.f32.xlu0 %v293
      %v295 = vpop.xlane.xlu0 %294
      %v296 = vadd.f32 %v283, %v284
      %297 = vadd.xlane.f32.xlu0 %v296
      %v298 = vpop.xlane.xlu0 %297
      %v299 = vadd.f32 %v285, %v286
      %300 = vadd.xlane.f32.xlu0 %v299
      %v301 = vpop.xlane.xlu0 %300
      %v302 = vadd.f32 %v287, %v288
      %303 = vadd.xlane.f32.xlu0 %v302
      %v304 = vpop.xlane.xlu0 %303
      %v305 = vmul.f32 %v295, 0.00390625
      %v306 = vmul.f32 %v298, 0.00390625
      %v307 = vmul.f32 %v301, 0.00390625
      %v308 = vmul.f32 %v304, 0.00390625
      %vm309 = vcmask 261120
      %v311 = vsel %vm309, %v289, 0
      %v314 = vsel %vm309, %v290, 0
      %v317 = vsel %vm309, %v291, 0
      %v320 = vsel %vm309, %v292, 0
      %322 = vmatprep.subr.mxu0 0.0
      %323 = vmatpush1.msra.mxu0 %v305
      %324 = vmatprep.subr.mxu0 0.0
      %325 = vmatpush1.msra.mxu0 %v306
      %326 = vmatprep.subr.mxu0 0.0
      %327 = vmatpush1.msra.mxu0 %v307
      %328 = vmatprep.subr.mxu0 0.0
      %329 = vmatpush1.msra.mxu0 %v308
      %330 = vmatprep.subr.mxu0 0.0
      %331 = vmatpush1.msra.mxu0 0.0
      %332 = vmatprep.subr.mxu0 0.0
      %333 = vmatpush1.msra.mxu0 0.0
      %334 = vmatprep.subr.mxu0 0.0
      %335 = vmatpush1.msra.mxu0 0.0
      %336 = vmatprep.subr.mxu0 0.0
      %337 = vmatpush1.msra.mxu0 0.0
      %338 = vmatprep.subr.mxu0 0.0
      %339 = vmatpush1.msra.mxu0 0.0
      %340 = vmatprep.subr.mxu0 0.0
      %341 = vmatpush1.msra.mxu0 0.0
      %342 = vmatprep.subr.mxu0 0.0
      %343 = vmatpush1.msra.mxu0 0.0
      %344 = vmatprep.subr.mxu0 0.0
      %345 = vmatpush1.msra.mxu0 0.0
      %346 = vmatprep.subr.mxu0 0.0
      %347 = vmatpush1.msra.mxu0 0.0
      %348 = vmatprep.subr.mxu0 0.0
      %349 = vmatpush1.msra.mxu0 0.0
      %350 = vmatprep.subr.mxu0 0.0
      %351 = vmatpush1.msra.mxu0 0.0
      %352 = vmatprep.subr.mxu0 0.0
      %353 = vmatpush1.msra.mxu0 0.0
      %354 = vmatprep.subr.mxu0 0.0
      %355 = vmatpush1.msra.mxu0 0.0
      %356 = vmatprep.subr.mxu0 0.0
      %357 = vmatpush1.msra.mxu0 0.0
      %358 = vmatprep.subr.mxu0 0.0
      %359 = vmatpush1.msra.mxu0 0.0
      %360 = vmatprep.subr.mxu0 0.0
      %361 = vmatpush1.msra.mxu0 0.0
      %362 = vmatprep.subr.mxu0 0.0
      %363 = vmatpush1.msra.mxu0 0.0
      %364 = vmatprep.subr.mxu0 0.0
      %365 = vmatpush1.msra.mxu0 0.0
      %366 = vmatprep.subr.mxu0 0.0
      %367 = vmatpush1.msra.mxu0 0.0
      %368 = vmatprep.subr.mxu0 0.0
      %369 = vmatpush1.msra.mxu0 0.0
      %370 = vmatprep.subr.mxu0 0.0
      %371 = vmatpush1.msra.mxu0 0.0
      %372 = vmatprep.subr.mxu0 0.0
      %373 = vmatpush1.msra.mxu0 0.0
      %374 = vmatprep.subr.mxu0 0.0
      %375 = vmatpush1.msra.mxu0 0.0
      %376 = vmatprep.subr.mxu0 0.0
      %377 = vmatpush1.msra.mxu0 0.0
      %378 = vmatprep.subr.mxu0 0.0
      %379 = vmatpush1.msra.mxu0 0.0
      %380 = vmatprep.subr.mxu0 0.0
      %381 = vmatpush1.msra.mxu0 0.0
      %382 = vmatprep.subr.mxu0 0.0
      %383 = vmatpush1.msra.mxu0 0.0
      %384 = vmatprep.subr.mxu0 0.0
      %385 = vmatpush1.msra.mxu0 0.0
      %386 = vmatprep.mubr.f32.mxu0 0.0
      %387 = vmatmul.mubr.f32.gmra.mrb[0].mxu0 %v311
      %v388 = vpop.f32.mrb[0].mxu0
      %v389 = vadd.f32 0.0, %v388
      %v390 = vpop.f32.mrb[0].mxu0
      %391 = vmatprep.mubr.f32.mxu0 0.0
      %392 = vmatmul.mubr.f32.gmra.mrb[0].mxu0 %v314
      %v393 = vpop.f32.mrb[0].mxu0
      %v394 = vadd.f32 0.0, %v393
      %v395 = vpop.f32.mrb[0].mxu0
      %396 = vmatprep.mubr.f32.mxu0 0.0
      %397 = vmatmul.mubr.f32.gmra.mrb[0].mxu0 %v317
      %v398 = vpop.f32.mrb[0].mxu0
      %v399 = vadd.f32 0.0, %v398
      %v400 = vpop.f32.mrb[0].mxu0
      %401 = vmatprep.mubr.f32.mxu0 0.0
      %402 = vmatmul.mubr.f32.gmra.mrb[0].mxu0 %v320
      %v403 = vpop.f32.mrb[0].mxu0
      %v404 = vadd.f32 0.0, %v403
      %v405 = vpop.f32.mrb[0].mxu0
      %406 = vdwg.mxu0
      %408 = vset.pattern.permute.xlu0 0
      %409 = vperm.xlu0 %408, %v389
      %v410 = vpop.permute.xlu0 %409
      %413 = vset.pattern.permute.xlu0 0
      %414 = vperm.xlu0 %413, %v394
      %v415 = vpop.permute.xlu0 %414
      %418 = vset.pattern.permute.xlu0 0
      %419 = vperm.xlu0 %418, %v399
      %v420 = vpop.permute.xlu0 %419
      %423 = vset.pattern.permute.xlu0 0
      %424 = vperm.xlu0 %423, %v404
      %v425 = vpop.permute.xlu0 %424
      %v427 = vsub.f32 %v281, %v410
      %v428 = vsub.f32 %v282, %v410
      %v429 = vsub.f32 %v283, %v415
      %v430 = vsub.f32 %v284, %v415
      %v431 = vsub.f32 %v285, %v420
      %v432 = vsub.f32 %v286, %v420
      %v433 = vsub.f32 %v287, %v425
      %v434 = vsub.f32 %v288, %v425
      %v435 = vmul.f32 %v427, %v427
      %v436 = vmul.f32 %v428, %v428
      %v437 = vmul.f32 %v429, %v429
      %v438 = vmul.f32 %v430, %v430
      %v439 = vmul.f32 %v431, %v431
      %v440 = vmul.f32 %v432, %v432
      %v441 = vmul.f32 %v433, %v433
      %v442 = vmul.f32 %v434, %v434
      %v443 = vadd.f32 %v435, %v436
      %444 = vadd.xlane.f32.xlu0 %v443
      %v445 = vpop.xlane.xlu0 %444
      %v446 = vadd.f32 %v437, %v438
      %447 = vadd.xlane.f32.xlu0 %v446
      %v448 = vpop.xlane.xlu0 %447
      %v449 = vadd.f32 %v439, %v440
      %450 = vadd.xlane.f32.xlu0 %v449
      %v451 = vpop.xlane.xlu0 %450
      %v452 = vadd.f32 %v441, %v442
      %453 = vadd.xlane.f32.xlu0 %v452
      %v454 = vpop.xlane.xlu0 %453
      %v455 = vmul.f32 %v445, 0.00390625
      %v456 = vmul.f32 %v448, 0.00390625
      %v457 = vmul.f32 %v451, 0.00390625
      %v458 = vmul.f32 %v454, 0.00390625
      %459 = vmatprep.subr.mxu0 0.0
      %460 = vmatpush1.msra.mxu0 %v455
      %461 = vmatprep.subr.mxu0 0.0
      %462 = vmatpush1.msra.mxu0 %v456
      %463 = vmatprep.subr.mxu0 0.0
      %464 = vmatpush1.msra.mxu0 %v457
      %465 = vmatprep.subr.mxu0 0.0
      %466 = vmatpush1.msra.mxu0 %v458
      %467 = vmatprep.subr.mxu0 0.0
      %468 = vmatpush1.msra.mxu0 0.0
      %469 = vmatprep.subr.mxu0 0.0
      %470 = vmatpush1.msra.mxu0 0.0
      %471 = vmatprep.subr.mxu0 0.0
      %472 = vmatpush1.msra.mxu0 0.0
      %473 = vmatprep.subr.mxu0 0.0
      %474 = vmatpush1.msra.mxu0 0.0
      %475 = vmatprep.subr.mxu0 0.0
      %476 = vmatpush1.msra.mxu0 0.0
      %477 = vmatprep.subr.mxu0 0.0
      %478 = vmatpush1.msra.mxu0 0.0
      %479 = vmatprep.subr.mxu0 0.0
      %480 = vmatpush1.msra.mxu0 0.0
      %481 = vmatprep.subr.mxu0 0.0
      %482 = vmatpush1.msra.mxu0 0.0
      %483 = vmatprep.subr.mxu0 0.0
      %484 = vmatpush1.msra.mxu0 0.0
      %485 = vmatprep.subr.mxu0 0.0
      %486 = vmatpush1.msra.mxu0 0.0
      %487 = vmatprep.subr.mxu0 0.0
      %488 = vmatpush1.msra.mxu0 0.0
      %489 = vmatprep.subr.mxu0 0.0
      %490 = vmatpush1.msra.mxu0 0.0
      %491 = vmatprep.subr.mxu0 0.0
      %492 = vmatpush1.msra.mxu0 0.0
      %493 = vmatprep.subr.mxu0 0.0
      %494 = vmatpush1.msra.mxu0 0.0
      %495 = vmatprep.subr.mxu0 0.0
      %496 = vmatpush1.msra.mxu0 0.0
      %497 = vmatprep.subr.mxu0 0.0
      %498 = vmatpush1.msra.mxu0 0.0
      %499 = vmatprep.subr.mxu0 0.0
      %500 = vmatpush1.msra.mxu0 0.0
      %501 = vmatprep.subr.mxu0 0.0
      %502 = vmatpush1.msra.mxu0 0.0
      %503 = vmatprep.subr.mxu0 0.0
      %504 = vmatpush1.msra.mxu0 0.0
      %505 = vmatprep.subr.mxu0 0.0
      %506 = vmatpush1.msra.mxu0 0.0
      %507 = vmatprep.subr.mxu0 0.0
      %508 = vmatpush1.msra.mxu0 0.0
      %509 = vmatprep.subr.mxu0 0.0
      %510 = vmatpush1.msra.mxu0 0.0
      %511 = vmatprep.subr.mxu0 0.0
      %512 = vmatpush1.msra.mxu0 0.0
      %513 = vmatprep.subr.mxu0 0.0
      %514 = vmatpush1.msra.mxu0 0.0
      %515 = vmatprep.subr.mxu0 0.0
      %516 = vmatpush1.msra.mxu0 0.0
      %517 = vmatprep.subr.mxu0 0.0
      %518 = vmatpush1.msra.mxu0 0.0
      %519 = vmatprep.subr.mxu0 0.0
      %520 = vmatpush1.msra.mxu0 0.0
      %521 = vmatprep.subr.mxu0 0.0
      %522 = vmatpush1.msra.mxu0 0.0
      %523 = vmatprep.mubr.f32.mxu0 0.0
      %524 = vmatmul.mubr.f32.gmra.mrb[0].mxu0 %v311
      %v525 = vpop.f32.mrb[0].mxu0
      %v526 = vadd.f32 1e-05, %v525
      %v527 = vpop.f32.mrb[0].mxu0
      %528 = vmatprep.mubr.f32.mxu0 0.0
      %529 = vmatmul.mubr.f32.gmra.mrb[0].mxu0 %v314
      %v530 = vpop.f32.mrb[0].mxu0
      %v531 = vadd.f32 1e-05, %v530
      %v532 = vpop.f32.mrb[0].mxu0
      %533 = vmatprep.mubr.f32.mxu0 0.0
      %534 = vmatmul.mubr.f32.gmra.mrb[0].mxu0 %v317
      %v535 = vpop.f32.mrb[0].mxu0
      %v536 = vadd.f32 1e-05, %v535
      %v537 = vpop.f32.mrb[0].mxu0
      %538 = vmatprep.mubr.f32.mxu0 0.0
      %539 = vmatmul.mubr.f32.gmra.mrb[0].mxu0 %v320
      %v540 = vpop.f32.mrb[0].mxu0
      %v541 = vadd.f32 1e-05, %v540
      %v542 = vpop.f32.mrb[0].mxu0
      %543 = vdwg.mxu0
      %v544 = vrsqrt.pop %v526
      %v545 = vrsqrt.pop %v531
      %v546 = vrsqrt.pop %v536
      %v547 = vrsqrt.pop %v541
      %549 = vset.pattern.permute.xlu0 0
      %550 = vperm.xlu0 %549, %v544
      %v551 = vpop.permute.xlu0 %550
      %554 = vset.pattern.permute.xlu0 0
      %555 = vperm.xlu0 %554, %v545
      %v556 = vpop.permute.xlu0 %555
      %559 = vset.pattern.permute.xlu0 0
      %560 = vperm.xlu0 %559, %v546
      %v561 = vpop.permute.xlu0 %560
      %564 = vset.pattern.permute.xlu0 0
      %565 = vperm.xlu0 %564, %v547
      %v566 = vpop.permute.xlu0 %565
      %v568 = vmul.f32 %v427, %v551
      %v569 = vmul.f32 %v428, %v551
      %v570 = vmul.f32 %v429, %v556
      %v571 = vmul.f32 %v430, %v556
      %v572 = vmul.f32 %v431, %v561
      %v573 = vmul.f32 %v432, %v561
      %v574 = vmul.f32 %v433, %v566
      %v575 = vmul.f32 %v434, %v566
      %v576 = vld [vmem:[%s2] sm:$0xff]
      %v577 = vld [vmem:[%s2 + $0x8] sm:$0xff]
      %v578 = vld [vmem:[%s2 + $0x10] sm:$0xff]
      %v579 = vld [vmem:[%s2 + $0x18] sm:$0xff]
      %581 = vset.pattern.permute.xlu0 0
      %582 = vperm.xlu0 %581, %v576
      %v583 = vpop.permute.xlu0 %582
      %586 = vset.pattern.permute.xlu0 0
      %587 = vperm.xlu0 %586, %v577
      %v588 = vpop.permute.xlu0 %587
      %591 = vset.pattern.permute.xlu0 0
      %592 = vperm.xlu0 %591, %v578
      %v593 = vpop.permute.xlu0 %592
      %596 = vset.pattern.permute.xlu0 0
      %597 = vperm.xlu0 %596, %v579
      %v598 = vpop.permute.xlu0 %597
      %v600 = vmul.f32 %v568, %v583
      %v601 = vmul.f32 %v569, %v583
      %v602 = vmul.f32 %v570, %v588
      %v603 = vmul.f32 %v571, %v588
      %v604 = vmul.f32 %v572, %v593
      %v605 = vmul.f32 %v573, %v593
      %v606 = vmul.f32 %v574, %v598
      %v607 = vmul.f32 %v575, %v598
      %v608 = vld [vmem:[%s3] sm:$0xff]
      %v609 = vld [vmem:[%s3 + $0x8] sm:$0xff]
      %v610 = vld [vmem:[%s3 + $0x10] sm:$0xff]
      %v611 = vld [vmem:[%s3 + $0x18] sm:$0xff]
      %613 = vset.pattern.permute.xlu0 0
      %614 = vperm.xlu0 %613, %v608
      %v615 = vpop.permute.xlu0 %614
      %618 = vset.pattern.permute.xlu0 0
      %619 = vperm.xlu0 %618, %v609
      %v620 = vpop.permute.xlu0 %619
      %623 = vset.pattern.permute.xlu0 0
      %624 = vperm.xlu0 %623, %v610
      %v625 = vpop.permute.xlu0 %624
      %628 = vset.pattern.permute.xlu0 0
      %629 = vperm.xlu0 %628, %v611
      %v630 = vpop.permute.xlu0 %629
      %v632 = vadd.f32 %v600, %v615
      %v633 = vadd.f32 %v601, %v615
      %v634 = vadd.f32 %v602, %v620
      %v635 = vadd.f32 %v603, %v620
      %v636 = vadd.f32 %v604, %v625
      %v637 = vadd.f32 %v605, %v625
      %v638 = vadd.f32 %v606, %v630
      %v639 = vadd.f32 %v607, %v630
      %v640 = vld [vmem:[%s4] sm:$0xf]
      %v641 = vld [vmem:[%s4 + $0x4] sm:$0xf]
      %v642 = vld [vmem:[%s4 + $0x8] sm:$0xf]
      %v643 = vld [vmem:[%s4 + $0xc] sm:$0xf]
      %v644 = vld [vmem:[%s4 + $0x10] sm:$0xf]
      %v645 = vld [vmem:[%s4 + $0x14] sm:$0xf]
      %v646 = vld [vmem:[%s4 + $0x18] sm:$0xf]
      %v647 = vld [vmem:[%s4 + $0x1c] sm:$0xf]
      %v648 = vld [vmem:[%s4 + $0x20] sm:$0xf]
      %v649 = vld [vmem:[%s4 + $0x24] sm:$0xf]
      %v650 = vld [vmem:[%s4 + $0x28] sm:$0xf]
      %v651 = vld [vmem:[%s4 + $0x2c] sm:$0xf]
      %v652 = vpack.c.bf16 %v634, %v632
      %v653 = vpack.c.bf16 %v635, %v633
      %v654 = vpack.c.bf16 %v638, %v636
      %v655 = vpack.c.bf16 %v639, %v637
      %v656 = vld [vmem:[%s5] sm:$0xff]
      %v657 = vld [vmem:[%s5 + $0x8] sm:$0xff]
      %v658 = vld [vmem:[%s5 + $0x10] sm:$0xff]
      %v659 = vld [vmem:[%s5 + $0x18] sm:$0xff]
      %v660 = vld [vmem:[%s5 + $0x20] sm:$0xff]
      %v661 = vld [vmem:[%s5 + $0x28] sm:$0xff]
      %v662 = vld [vmem:[%s5 + $0x30] sm:$0xff]
      %v663 = vld [vmem:[%s5 + $0x38] sm:$0xff]
      %v664 = vld [vmem:[%s5 + $0x40] sm:$0xff]
      %v665 = vld [vmem:[%s5 + $0x48] sm:$0xff]
      %v666 = vld [vmem:[%s5 + $0x50] sm:$0xff]
      %v667 = vld [vmem:[%s5 + $0x58] sm:$0xff]
      %669 = vset.pattern.permute.xlu0 0
      %670 = vperm.xlu0 %669, %v656
      %v671 = vpop.permute.xlu0 %670
      %674 = vset.pattern.permute.xlu0 0
      %675 = vperm.xlu0 %674, %v657
      %v676 = vpop.permute.xlu0 %675
      %679 = vset.pattern.permute.xlu0 0
      %680 = vperm.xlu0 %679, %v658
      %v681 = vpop.permute.xlu0 %680
      %684 = vset.pattern.permute.xlu0 0
      %685 = vperm.xlu0 %684, %v659
      %v686 = vpop.permute.xlu0 %685
      %689 = vset.pattern.permute.xlu0 0
      %690 = vperm.xlu0 %689, %v660
      %v691 = vpop.permute.xlu0 %690
      %694 = vset.pattern.permute.xlu0 0
      %695 = vperm.xlu0 %694, %v661
      %v696 = vpop.permute.xlu0 %695
      %699 = vset.pattern.permute.xlu0 0
      %700 = vperm.xlu0 %699, %v662
      %v701 = vpop.permute.xlu0 %700
      %704 = vset.pattern.permute.xlu0 0
      %705 = vperm.xlu0 %704, %v663
      %v706 = vpop.permute.xlu0 %705
      %709 = vset.pattern.permute.xlu0 0
      %710 = vperm.xlu0 %709, %v664
      %v711 = vpop.permute.xlu0 %710
      %714 = vset.pattern.permute.xlu0 0
      %715 = vperm.xlu0 %714, %v665
      %v716 = vpop.permute.xlu0 %715
      %719 = vset.pattern.permute.xlu0 0
      %720 = vperm.xlu0 %719, %v666
      %v721 = vpop.permute.xlu0 %720
      %724 = vset.pattern.permute.xlu0 0
      %725 = vperm.xlu0 %724, %v667
      %v726 = vpop.permute.xlu0 %725
      %v740 = vunpack.c.l.b16 %v640
      %v741 = vunpack.c.l.b16 %v641
      %v742 = vunpack.c.l.b16 %v642
      %v743 = vunpack.c.l.b16 %v643
      %v744 = vunpack.c.l.b16 %v644
      %v745 = vunpack.c.l.b16 %v645
      %v746 = vunpack.c.l.b16 %v646
      %v747 = vunpack.c.l.b16 %v647
      %v748 = vunpack.c.l.b16 %v648
      %v749 = vunpack.c.l.b16 %v649
      %v750 = vunpack.c.l.b16 %v650
      %v751 = vunpack.c.l.b16 %v651
      %v752 = vpack.c.b16 %v741, %v740
      %v753 = vpack.c.b16 %v743, %v742
      %v754 = vpack.c.b16 %v745, %v744
      %v755 = vpack.c.b16 %v747, %v746
      %v756 = vpack.c.b16 %v749, %v748
      %v757 = vpack.c.b16 %v751, %v750
      %v759 = vsel %vm309, %v752, 0
      %v762 = vsel %vm309, %v753, 0
      %v765 = vsel %vm309, %v754, 0
      %v768 = vsel %vm309, %v755, 0
      %v771 = vsel %vm309, %v756, 0
      %v774 = vsel %vm309, %v757, 0
      %776 = vmatprep.subr.bf16.mxu0 %v653
      %777 = vmatpush1.bf16.msra.mxu0 %v652
      %778 = vmatprep.subr.bf16.mxu0 %v655
      %779 = vmatpush1.bf16.msra.mxu0 %v654
      %780 = vmatprep.subr.bf16.mxu0 0
      %781 = vmatpush1.bf16.msra.mxu0 0
      %782 = vmatprep.subr.bf16.mxu0 0
      %783 = vmatpush1.bf16.msra.mxu0 0
      %784 = vmatprep.subr.bf16.mxu0 0
      %785 = vmatpush1.bf16.msra.mxu0 0
      %786 = vmatprep.subr.bf16.mxu0 0
      %787 = vmatpush1.bf16.msra.mxu0 0
      %788 = vmatprep.subr.bf16.mxu0 0
      %789 = vmatpush1.bf16.msra.mxu0 0
      %790 = vmatprep.subr.bf16.mxu0 0
      %791 = vmatpush1.bf16.msra.mxu0 0
      %792 = vmatprep.subr.bf16.mxu0 0
      %793 = vmatpush1.bf16.msra.mxu0 0
      %794 = vmatprep.subr.bf16.mxu0 0
      %795 = vmatpush1.bf16.msra.mxu0 0
      %796 = vmatprep.subr.bf16.mxu0 0
      %797 = vmatpush1.bf16.msra.mxu0 0
      %798 = vmatprep.subr.bf16.mxu0 0
      %799 = vmatpush1.bf16.msra.mxu0 0
      %800 = vmatprep.subr.bf16.mxu0 0
      %801 = vmatpush1.bf16.msra.mxu0 0
      %802 = vmatprep.subr.bf16.mxu0 0
      %803 = vmatpush1.bf16.msra.mxu0 0
      %804 = vmatprep.subr.bf16.mxu0 0
      %805 = vmatpush1.bf16.msra.mxu0 0
      %806 = vmatprep.subr.bf16.mxu0 0
      %807 = vmatpush1.bf16.msra.mxu0 0
      %808 = vmatprep.mubr.bf16.mxu0 0
      %809 = vmatmul.mubr.bf16.gmra.mrb[0].mxu0 %v759
      %v810 = vpop.f32.mrb[0].mxu0
      %v811 = vadd.f32 %v671, %v810
      %v812 = vpop.f32.mrb[0].mxu0
      %v813 = vadd.f32 %v671, %v812
      %v814 = vpop.f32.mrb[0].mxu0
      %v815 = vadd.f32 %v676, %v814
      %v816 = vpop.f32.mrb[0].mxu0
      %v817 = vadd.f32 %v676, %v816
      %818 = vmatprep.mubr.bf16.mxu0 0
      %819 = vmatmul.mubr.bf16.gmra.mrb[0].mxu0 %v762
      %v820 = vpop.f32.mrb[0].mxu0
      %v821 = vadd.f32 %v681, %v820
      %v822 = vpop.f32.mrb[0].mxu0
      %v823 = vadd.f32 %v681, %v822
      %v824 = vpop.f32.mrb[0].mxu0
      %v825 = vadd.f32 %v686, %v824
      %v826 = vpop.f32.mrb[0].mxu0
      %v827 = vadd.f32 %v686, %v826
      %828 = vmatprep.mubr.bf16.mxu0 0
      %829 = vmatmul.mubr.bf16.gmra.mrb[0].mxu0 %v765
      %v830 = vpop.f32.mrb[0].mxu0
      %v831 = vadd.f32 %v691, %v830
      %v832 = vpop.f32.mrb[0].mxu0
      %v833 = vadd.f32 %v691, %v832
      %v834 = vpop.f32.mrb[0].mxu0
      %v835 = vadd.f32 %v696, %v834
      %v836 = vpop.f32.mrb[0].mxu0
      %v837 = vadd.f32 %v696, %v836
      %838 = vmatprep.mubr.bf16.mxu0 0
      %839 = vmatmul.mubr.bf16.gmra.mrb[0].mxu0 %v768
      %v840 = vpop.f32.mrb[0].mxu0
      %v841 = vadd.f32 %v701, %v840
      %v842 = vpop.f32.mrb[0].mxu0
      %v843 = vadd.f32 %v701, %v842
      %v844 = vpop.f32.mrb[0].mxu0
      %v845 = vadd.f32 %v706, %v844
      %v846 = vpop.f32.mrb[0].mxu0
      %v847 = vadd.f32 %v706, %v846
      %848 = vmatprep.mubr.bf16.mxu0 0
      %849 = vmatmul.mubr.bf16.gmra.mrb[0].mxu0 %v771
      %v850 = vpop.f32.mrb[0].mxu0
      %v851 = vadd.f32 %v711, %v850
      %v852 = vpop.f32.mrb[0].mxu0
      %v853 = vadd.f32 %v711, %v852
      %v854 = vpop.f32.mrb[0].mxu0
      %v855 = vadd.f32 %v716, %v854
      %v856 = vpop.f32.mrb[0].mxu0
      %v857 = vadd.f32 %v716, %v856
      %858 = vmatprep.mubr.bf16.mxu0 0
      %859 = vmatmul.mubr.bf16.gmra.mrb[0].mxu0 %v774
      %v860 = vpop.f32.mrb[0].mxu0
      %v861 = vadd.f32 %v721, %v860
      %v862 = vpop.f32.mrb[0].mxu0
      %v863 = vadd.f32 %v721, %v862
      %v864 = vpop.f32.mrb[0].mxu0
      %v865 = vadd.f32 %v726, %v864
      %v866 = vpop.f32.mrb[0].mxu0
      %v867 = vadd.f32 %v726, %v866
      %868 = vdwg.mxu0
      %869 = vxpose.xlu0.b32.start [1/16] %v811, 128
      %870 = vxpose.xlu0.b32.cont [2/16] %v815, 128
      %871 = vxpose.xlu0.b32.cont [3/16] %v821, 128
      %872 = vxpose.xlu0.b32.cont [4/16] %v825, 128
      %873 = vxpose.xlu0.b32.cont [5/16] 0.0, 128
      %874 = vxpose.xlu0.b32.cont [6/16] 0.0, 128
      %875 = vxpose.xlu0.b32.cont [7/16] 0.0, 128
      %876 = vxpose.xlu0.b32.cont [8/16] 0.0, 128
      %877 = vxpose.xlu0.b32.cont [9/16] 0.0, 128
      %878 = vxpose.xlu0.b32.cont [10/16] 0.0, 128
      %879 = vxpose.xlu0.b32.cont [11/16] 0.0, 128
      %880 = vxpose.xlu0.b32.cont [12/16] 0.0, 128
      %881 = vxpose.xlu0.b32.cont [13/16] 0.0, 128
      %882 = vxpose.xlu0.b32.cont [14/16] 0.0, 128
      %883 = vxpose.xlu0.b32.cont [15/16] 0.0, 128
      %884 = vxpose.xlu0.b32.end [16/16] 0.0, 128
      %v885 = vpop.trf.xlu0
      %v886 = vpop.trf.xlu0
      %v887 = vpop.trf.xlu0
      %v888 = vpop.trf.xlu0
      %v889 = vpop.trf.xlu0
      %v890 = vpop.trf.xlu0
      %v891 = vpop.trf.xlu0
      %v892 = vpop.trf.xlu0
      %v893 = vpop.trf.xlu0
      %v894 = vpop.trf.xlu0
      %v895 = vpop.trf.xlu0
      %v896 = vpop.trf.xlu0
      %v897 = vpop.trf.xlu0
      %v898 = vpop.trf.xlu0
      %v899 = vpop.trf.xlu0
      %v900 = vpop.trf.xlu0
      %901 = vxpose.xlu0.b32.start [1/16] %v813, 128
      %902 = vxpose.xlu0.b32.cont [2/16] %v817, 128
      %903 = vxpose.xlu0.b32.cont [3/16] %v823, 128
      %904 = vxpose.xlu0.b32.cont [4/16] %v827, 128
      %905 = vxpose.xlu0.b32.cont [5/16] 0.0, 128
      %906 = vxpose.xlu0.b32.cont [6/16] 0.0, 128
      %907 = vxpose.xlu0.b32.cont [7/16] 0.0, 128
      %908 = vxpose.xlu0.b32.cont [8/16] 0.0, 128
      %909 = vxpose.xlu0.b32.cont [9/16] 0.0, 128
      %910 = vxpose.xlu0.b32.cont [10/16] 0.0, 128
      %911 = vxpose.xlu0.b32.cont [11/16] 0.0, 128
      %912 = vxpose.xlu0.b32.cont [12/16] 0.0, 128
      %913 = vxpose.xlu0.b32.cont [13/16] 0.0, 128
      %914 = vxpose.xlu0.b32.cont [14/16] 0.0, 128
      %915 = vxpose.xlu0.b32.cont [15/16] 0.0, 128
      %916 = vxpose.xlu0.b32.end [16/16] 0.0, 128
      %v917 = vpop.trf.xlu0
      %v918 = vpop.trf.xlu0
      %v919 = vpop.trf.xlu0
      %v920 = vpop.trf.xlu0
      %v921 = vpop.trf.xlu0
      %v922 = vpop.trf.xlu0
      %v923 = vpop.trf.xlu0
      %v924 = vpop.trf.xlu0
      %v925 = vpop.trf.xlu0
      %v926 = vpop.trf.xlu0
      %v927 = vpop.trf.xlu0
      %v928 = vpop.trf.xlu0
      %v929 = vpop.trf.xlu0
      %v930 = vpop.trf.xlu0
      %v931 = vpop.trf.xlu0
      %v932 = vpop.trf.xlu0
      %v933 = vpack.c.bf16 %v886, %v885
      %v934 = vpack.c.bf16 %v888, %v887
      %v935 = vpack.c.bf16 %v890, %v889
      %v936 = vpack.c.bf16 %v892, %v891
      %v937 = vpack.c.bf16 %v894, %v893
      %v938 = vpack.c.bf16 %v896, %v895
      %v939 = vpack.c.bf16 %v898, %v897
      %v940 = vpack.c.bf16 %v900, %v899
      %v941 = vpack.c.bf16 %v918, %v917
      %v942 = vpack.c.bf16 %v920, %v919
      %v943 = vpack.c.bf16 %v922, %v921
      %v944 = vpack.c.bf16 %v924, %v923
      %v945 = vpack.c.bf16 %v926, %v925
      %v946 = vpack.c.bf16 %v928, %v927
      %v947 = vpack.c.bf16 %v930, %v929
      %v948 = vpack.c.bf16 %v932, %v931
      %v949 = vpack.c.bf16 %v835, %v831
      %v950 = vpack.c.bf16 %v837, %v833
      %v951 = vpack.c.bf16 %v845, %v841
      %v952 = vpack.c.bf16 %v847, %v843
      %v954 = vsel %vm309, %v933, 0
      %v957 = vsel %vm309, %v934, 0
      %v960 = vsel %vm309, %v935, 0
      %v963 = vsel %vm309, %v936, 0
      %v966 = vsel %vm309, %v937, 0
      %v969 = vsel %vm309, %v938, 0
      %v972 = vsel %vm309, %v939, 0
      %v975 = vsel %vm309, %v940, 0
      %v978 = vsel %vm309, %v941, 0
      %v981 = vsel %vm309, %v942, 0
      %v984 = vsel %vm309, %v943, 0
      %v987 = vsel %vm309, %v944, 0
      %v990 = vsel %vm309, %v945, 0
      %v993 = vsel %vm309, %v946, 0
      %v996 = vsel %vm309, %v947, 0
      %v999 = vsel %vm309, %v948, 0
      %1001 = vmatprep.subr.bf16.mxu0 %v950
      %1002 = vmatpush1.bf16.msra.mxu0 %v949
      %1003 = vmatprep.subr.bf16.mxu0 %v952
      %1004 = vmatpush1.bf16.msra.mxu0 %v951
      %1005 = vmatprep.subr.bf16.mxu0 0
      %1006 = vmatpush1.bf16.msra.mxu0 0
      %1007 = vmatprep.subr.bf16.mxu0 0
      %1008 = vmatpush1.bf16.msra.mxu0 0
      %1009 = vmatprep.subr.bf16.mxu0 0
      %1010 = vmatpush1.bf16.msra.mxu0 0
      %1011 = vmatprep.subr.bf16.mxu0 0
      %1012 = vmatpush1.bf16.msra.mxu0 0
      %1013 = vmatprep.subr.bf16.mxu0 0
      %1014 = vmatpush1.bf16.msra.mxu0 0
      %1015 = vmatprep.subr.bf16.mxu0 0
      %1016 = vmatpush1.bf16.msra.mxu0 0
      %1017 = vmatprep.subr.bf16.mxu0 0
      %1018 = vmatpush1.bf16.msra.mxu0 0
      %1019 = vmatprep.subr.bf16.mxu0 0
      %1020 = vmatpush1.bf16.msra.mxu0 0
      %1021 = vmatprep.subr.bf16.mxu0 0
      %1022 = vmatpush1.bf16.msra.mxu0 0
      %1023 = vmatprep.subr.bf16.mxu0 0
      %1024 = vmatpush1.bf16.msra.mxu0 0
      %1025 = vmatprep.subr.bf16.mxu0 0
      %1026 = vmatpush1.bf16.msra.mxu0 0
      %1027 = vmatprep.subr.bf16.mxu0 0
      %1028 = vmatpush1.bf16.msra.mxu0 0
      %1029 = vmatprep.subr.bf16.mxu0 0
      %1030 = vmatpush1.bf16.msra.mxu0 0
      %1031 = vmatprep.subr.bf16.mxu0 0
      %1032 = vmatpush1.bf16.msra.mxu0 0
      %1033 = vmatprep.mubr.bf16.mxu0 0
      %1034 = vmatmul.mubr.bf16.gmra.mrb[0].mxu0 %v954
      %v1035 = vpop.f32.mrb[0].mxu0
      %v1036 = vadd.f32 0.0, %v1035
      %v1037 = vpop.f32.mrb[0].mxu0
      %v1038 = vadd.f32 0.0, %v1037
      %v1039 = vpop.f32.mrb[0].mxu0
      %v1040 = vadd.f32 0.0, %v1039
      %v1041 = vpop.f32.mrb[0].mxu0
      %v1042 = vadd.f32 0.0, %v1041
      %1043 = vmatprep.mubr.bf16.mxu0 0
      %1044 = vmatmul.mubr.bf16.gmra.mrb[0].mxu0 %v957
      %v1045 = vpop.f32.mrb[0].mxu0
      %v1046 = vadd.f32 0.0, %v1045
      %v1047 = vpop.f32.mrb[0].mxu0
      %v1048 = vadd.f32 0.0, %v1047
      %v1049 = vpop.f32.mrb[0].mxu0
      %v1050 = vadd.f32 0.0, %v1049
      %v1051 = vpop.f32.mrb[0].mxu0
      %v1052 = vadd.f32 0.0, %v1051
      %1053 = vmatprep.mubr.bf16.mxu0 0
      %1054 = vmatmul.mubr.bf16.gmra.mrb[0].mxu0 %v960
      %v1055 = vpop.f32.mrb[0].mxu0
      %v1056 = vadd.f32 0.0, %v1055
      %v1057 = vpop.f32.mrb[0].mxu0
      %v1058 = vadd.f32 0.0, %v1057
      %v1059 = vpop.f32.mrb[0].mxu0
      %v1060 = vadd.f32 0.0, %v1059
      %v1061 = vpop.f32.mrb[0].mxu0
      %v1062 = vadd.f32 0.0, %v1061
      %1063 = vmatprep.mubr.bf16.mxu0 0
      %1064 = vmatmul.mubr.bf16.gmra.mrb[0].mxu0 %v963
      %v1065 = vpop.f32.mrb[0].mxu0
      %v1066 = vadd.f32 0.0, %v1065
      %v1067 = vpop.f32.mrb[0].mxu0
      %v1068 = vadd.f32 0.0, %v1067
      %v1069 = vpop.f32.mrb[0].mxu0
      %v1070 = vadd.f32 0.0, %v1069
      %v1071 = vpop.f32.mrb[0].mxu0
      %v1072 = vadd.f32 0.0, %v1071
      %1073 = vmatprep.mubr.bf16.mxu0 0
      %1074 = vmatmul.mubr.bf16.gmra.mrb[0].mxu0 %v966
      %v1075 = vpop.f32.mrb[0].mxu0
      %v1076 = vadd.f32 0.0, %v1075
      %v1077 = vpop.f32.mrb[0].mxu0
      %v1078 = vadd.f32 0.0, %v1077
      %v1079 = vpop.f32.mrb[0].mxu0
      %v1080 = vadd.f32 0.0, %v1079
      %v1081 = vpop.f32.mrb[0].mxu0
      %v1082 = vadd.f32 0.0, %v1081
      %1083 = vmatprep.mubr.bf16.mxu0 0
      %1084 = vmatmul.mubr.bf16.gmra.mrb[0].mxu0 %v969
      %v1085 = vpop.f32.mrb[0].mxu0
      %v1086 = vadd.f32 0.0, %v1085
      %v1087 = vpop.f32.mrb[0].mxu0
      %v1088 = vadd.f32 0.0, %v1087
      %v1089 = vpop.f32.mrb[0].mxu0
      %v1090 = vadd.f32 0.0, %v1089
      %v1091 = vpop.f32.mrb[0].mxu0
      %v1092 = vadd.f32 0.0, %v1091
      %1093 = vmatprep.mubr.bf16.mxu0 0
      %1094 = vmatmul.mubr.bf16.gmra.mrb[0].mxu0 %v972
      %v1095 = vpop.f32.mrb[0].mxu0
      %v1096 = vadd.f32 0.0, %v1095
      %v1097 = vpop.f32.mrb[0].mxu0
      %v1098 = vadd.f32 0.0, %v1097
      %v1099 = vpop.f32.mrb[0].mxu0
      %v1100 = vadd.f32 0.0, %v1099
      %v1101 = vpop.f32.mrb[0].mxu0
      %v1102 = vadd.f32 0.0, %v1101
      %1103 = vmatprep.mubr.bf16.mxu0 0
      %1104 = vmatmul.mubr.bf16.gmra.mrb[0].mxu0 %v975
      %v1105 = vpop.f32.mrb[0].mxu0
      %v1106 = vadd.f32 0.0, %v1105
      %v1107 = vpop.f32.mrb[0].mxu0
      %v1108 = vadd.f32 0.0, %v1107
      %v1109 = vpop.f32.mrb[0].mxu0
      %v1110 = vadd.f32 0.0, %v1109
      %v1111 = vpop.f32.mrb[0].mxu0
      %v1112 = vadd.f32 0.0, %v1111
      %1113 = vmatprep.mubr.bf16.mxu0 0
      %1114 = vmatmul.mubr.bf16.gmra.mrb[0].mxu0 %v978
      %v1115 = vpop.f32.mrb[0].mxu0
      %v1116 = vadd.f32 0.0, %v1115
      %v1117 = vpop.f32.mrb[0].mxu0
      %v1118 = vadd.f32 0.0, %v1117
      %v1119 = vpop.f32.mrb[0].mxu0
      %v1120 = vadd.f32 0.0, %v1119
      %v1121 = vpop.f32.mrb[0].mxu0
      %v1122 = vadd.f32 0.0, %v1121
      %1123 = vmatprep.mubr.bf16.mxu0 0
      %1124 = vmatmul.mubr.bf16.gmra.mrb[0].mxu0 %v981
      %v1125 = vpop.f32.mrb[0].mxu0
      %v1126 = vadd.f32 0.0, %v1125
      %v1127 = vpop.f32.mrb[0].mxu0
      %v1128 = vadd.f32 0.0, %v1127
      %v1129 = vpop.f32.mrb[0].mxu0
      %v1130 = vadd.f32 0.0, %v1129
      %v1131 = vpop.f32.mrb[0].mxu0
      %v1132 = vadd.f32 0.0, %v1131
      %1133 = vmatprep.mubr.bf16.mxu0 0
      %1134 = vmatmul.mubr.bf16.gmra.mrb[0].mxu0 %v984
      %v1135 = vpop.f32.mrb[0].mxu0
      %v1136 = vadd.f32 0.0, %v1135
      %v1137 = vpop.f32.mrb[0].mxu0
      %v1138 = vadd.f32 0.0, %v1137
      %v1139 = vpop.f32.mrb[0].mxu0
      %v1140 = vadd.f32 0.0, %v1139
      %v1141 = vpop.f32.mrb[0].mxu0
      %v1142 = vadd.f32 0.0, %v1141
      %1143 = vmatprep.mubr.bf16.mxu0 0
      %1144 = vmatmul.mubr.bf16.gmra.mrb[0].mxu0 %v987
      %v1145 = vpop.f32.mrb[0].mxu0
      %v1146 = vadd.f32 0.0, %v1145
      %v1147 = vpop.f32.mrb[0].mxu0
      %v1148 = vadd.f32 0.0, %v1147
      %v1149 = vpop.f32.mrb[0].mxu0
      %v1150 = vadd.f32 0.0, %v1149
      %v1151 = vpop.f32.mrb[0].mxu0
      %v1152 = vadd.f32 0.0, %v1151
      %1153 = vmatprep.mubr.bf16.mxu0 0
      %1154 = vmatmul.mubr.bf16.gmra.mrb[0].mxu0 %v990
      %v1155 = vpop.f32.mrb[0].mxu0
      %v1156 = vadd.f32 0.0, %v1155
      %v1157 = vpop.f32.mrb[0].mxu0
      %v1158 = vadd.f32 0.0, %v1157
      %v1159 = vpop.f32.mrb[0].mxu0
      %v1160 = vadd.f32 0.0, %v1159
      %v1161 = vpop.f32.mrb[0].mxu0
      %v1162 = vadd.f32 0.0, %v1161
      %1163 = vmatprep.mubr.bf16.mxu0 0
      %1164 = vmatmul.mubr.bf16.gmra.mrb[0].mxu0 %v993
      %v1165 = vpop.f32.mrb[0].mxu0
      %v1166 = vadd.f32 0.0, %v1165
      %v1167 = vpop.f32.mrb[0].mxu0
      %v1168 = vadd.f32 0.0, %v1167
      %v1169 = vpop.f32.mrb[0].mxu0
      %v1170 = vadd.f32 0.0, %v1169
      %v1171 = vpop.f32.mrb[0].mxu0
      %v1172 = vadd.f32 0.0, %v1171
      %1173 = vmatprep.mubr.bf16.mxu0 0
      %1174 = vmatmul.mubr.bf16.gmra.mrb[0].mxu0 %v996
      %v1175 = vpop.f32.mrb[0].mxu0
      %v1176 = vadd.f32 0.0, %v1175
      %v1177 = vpop.f32.mrb[0].mxu0
      %v1178 = vadd.f32 0.0, %v1177
      %v1179 = vpop.f32.mrb[0].mxu0
      %v1180 = vadd.f32 0.0, %v1179
      %v1181 = vpop.f32.mrb[0].mxu0
      %v1182 = vadd.f32 0.0, %v1181
      %1183 = vmatprep.mubr.bf16.mxu0 0
      %1184 = vmatmul.mubr.bf16.gmra.mrb[0].mxu0 %v999
      %v1185 = vpop.f32.mrb[0].mxu0
      %v1186 = vadd.f32 0.0, %v1185
      %v1187 = vpop.f32.mrb[0].mxu0
      %v1188 = vadd.f32 0.0, %v1187
      %v1189 = vpop.f32.mrb[0].mxu0
      %v1190 = vadd.f32 0.0, %v1189
      %v1191 = vpop.f32.mrb[0].mxu0
      %v1192 = vadd.f32 0.0, %v1191
      %1193 = vdwg.mxu0
      %v1194 = vmax.f32 %v1036, %v1038
      %1195 = vmax.xlane.f32.xlu0 %v1194
      %v1196 = vpop.xlane.xlu0 %1195
      %v1197 = vmax.f32 %v1040, %v1042
      %1198 = vmax.xlane.f32.xlu0 %v1197
      %v1199 = vpop.xlane.xlu0 %1198
      %v1200 = vmax.f32 %v1046, %v1048
      %1201 = vmax.xlane.f32.xlu0 %v1200
      %v1202 = vpop.xlane.xlu0 %1201
      %v1203 = vmax.f32 %v1050, %v1052
      %1204 = vmax.xlane.f32.xlu0 %v1203
      %v1205 = vpop.xlane.xlu0 %1204
      %v1206 = vmax.f32 %v1056, %v1058
      %1207 = vmax.xlane.f32.xlu0 %v1206
      %v1208 = vpop.xlane.xlu0 %1207
      %v1209 = vmax.f32 %v1060, %v1062
      %1210 = vmax.xlane.f32.xlu0 %v1209
      %v1211 = vpop.xlane.xlu0 %1210
      %v1212 = vmax.f32 %v1066, %v1068
      %1213 = vmax.xlane.f32.xlu0 %v1212
      %v1214 = vpop.xlane.xlu0 %1213
      %v1215 = vmax.f32 %v1070, %v1072
      %1216 = vmax.xlane.f32.xlu0 %v1215
      %v1217 = vpop.xlane.xlu0 %1216
      %v1218 = vmax.f32 %v1076, %v1078
      %1219 = vmax.xlane.f32.xlu0 %v1218
      %v1220 = vpop.xlane.xlu0 %1219
      %v1221 = vmax.f32 %v1080, %v1082
      %1222 = vmax.xlane.f32.xlu0 %v1221
      %v1223 = vpop.xlane.xlu0 %1222
      %v1224 = vmax.f32 %v1086, %v1088
      %1225 = vmax.xlane.f32.xlu0 %v1224
      %v1226 = vpop.xlane.xlu0 %1225
      %v1227 = vmax.f32 %v1090, %v1092
      %1228 = vmax.xlane.f32.xlu0 %v1227
      %v1229 = vpop.xlane.xlu0 %1228
      %v1230 = vmax.f32 %v1096, %v1098
      %1231 = vmax.xlane.f32.xlu0 %v1230
      %v1232 = vpop.xlane.xlu0 %1231
      %v1233 = vmax.f32 %v1100, %v1102
      %1234 = vmax.xlane.f32.xlu0 %v1233
      %v1235 = vpop.xlane.xlu0 %1234
      %v1236 = vmax.f32 %v1106, %v1108
      %1237 = vmax.xlane.f32.xlu0 %v1236
      %v1238 = vpop.xlane.xlu0 %1237
      %v1239 = vmax.f32 %v1110, %v1112
      %1240 = vmax.xlane.f32.xlu0 %v1239
      %v1241 = vpop.xlane.xlu0 %1240
      %v1242 = vmax.f32 %v1116, %v1118
      %1243 = vmax.xlane.f32.xlu0 %v1242
      %v1244 = vpop.xlane.xlu0 %1243
      %v1245 = vmax.f32 %v1120, %v1122
      %1246 = vmax.xlane.f32.xlu0 %v1245
      %v1247 = vpop.xlane.xlu0 %1246
      %v1248 = vmax.f32 %v1126, %v1128
      %1249 = vmax.xlane.f32.xlu0 %v1248
      %v1250 = vpop.xlane.xlu0 %1249
      %v1251 = vmax.f32 %v1130, %v1132
      %1252 = vmax.xlane.f32.xlu0 %v1251
      %v1253 = vpop.xlane.xlu0 %1252
      %v1254 = vmax.f32 %v1136, %v1138
      %1255 = vmax.xlane.f32.xlu0 %v1254
      %v1256 = vpop.xlane.xlu0 %1255
      %v1257 = vmax.f32 %v1140, %v1142
      %1258 = vmax.xlane.f32.xlu0 %v1257
      %v1259 = vpop.xlane.xlu0 %1258
      %v1260 = vmax.f32 %v1146, %v1148
      %1261 = vmax.xlane.f32.xlu0 %v1260
      %v1262 = vpop.xlane.xlu0 %1261
      %v1263 = vmax.f32 %v1150, %v1152
      %1264 = vmax.xlane.f32.xlu0 %v1263
      %v1265 = vpop.xlane.xlu0 %1264
      %v1266 = vmax.f32 %v1156, %v1158
      %1267 = vmax.xlane.f32.xlu0 %v1266
      %v1268 = vpop.xlane.xlu0 %1267
      %v1269 = vmax.f32 %v1160, %v1162
      %1270 = vmax.xlane.f32.xlu0 %v1269
      %v1271 = vpop.xlane.xlu0 %1270
      %v1272 = vmax.f32 %v1166, %v1168
      %1273 = vmax.xlane.f32.xlu0 %v1272
      %v1274 = vpop.xlane.xlu0 %1273
      %v1275 = vmax.f32 %v1170, %v1172
      %1276 = vmax.xlane.f32.xlu0 %v1275
      %v1277 = vpop.xlane.xlu0 %1276
      %v1278 = vmax.f32 %v1176, %v1178
      %1279 = vmax.xlane.f32.xlu0 %v1278
      %v1280 = vpop.xlane.xlu0 %1279
      %v1281 = vmax.f32 %v1180, %v1182
      %1282 = vmax.xlane.f32.xlu0 %v1281
      %v1283 = vpop.xlane.xlu0 %1282
      %v1284 = vmax.f32 %v1186, %v1188
      %1285 = vmax.xlane.f32.xlu0 %v1284
      %v1286 = vpop.xlane.xlu0 %1285
      %v1287 = vmax.f32 %v1190, %v1192
      %1288 = vmax.xlane.f32.xlu0 %v1287
      %v1289 = vpop.xlane.xlu0 %1288
      %v1290 = vsub.f32 %v1036, %v1196
      %v1291 = vsub.f32 %v1038, %v1196
      %v1292 = vsub.f32 %v1040, %v1199
      %v1293 = vsub.f32 %v1042, %v1199
      %v1294 = vsub.f32 %v1046, %v1202
      %v1295 = vsub.f32 %v1048, %v1202
      %v1296 = vsub.f32 %v1050, %v1205
      %v1297 = vsub.f32 %v1052, %v1205
      %v1298 = vsub.f32 %v1056, %v1208
      %v1299 = vsub.f32 %v1058, %v1208
      %v1300 = vsub.f32 %v1060, %v1211
      %v1301 = vsub.f32 %v1062, %v1211
      %v1302 = vsub.f32 %v1066, %v1214
      %v1303 = vsub.f32 %v1068, %v1214
      %v1304 = vsub.f32 %v1070, %v1217
      %v1305 = vsub.f32 %v1072, %v1217
      %v1306 = vsub.f32 %v1076, %v1220
      %v1307 = vsub.f32 %v1078, %v1220
      %v1308 = vsub.f32 %v1080, %v1223
      %v1309 = vsub.f32 %v1082, %v1223
      %v1310 = vsub.f32 %v1086, %v1226
      %v1311 = vsub.f32 %v1088, %v1226
      %v1312 = vsub.f32 %v1090, %v1229
      %v1313 = vsub.f32 %v1092, %v1229
      %v1314 = vsub.f32 %v1096, %v1232
      %v1315 = vsub.f32 %v1098, %v1232
      %v1316 = vsub.f32 %v1100, %v1235
      %v1317 = vsub.f32 %v1102, %v1235
      %v1318 = vsub.f32 %v1106, %v1238
      %v1319 = vsub.f32 %v1108, %v1238
      %v1320 = vsub.f32 %v1110, %v1241
      %v1321 = vsub.f32 %v1112, %v1241
      %v1322 = vsub.f32 %v1116, %v1244
      %v1323 = vsub.f32 %v1118, %v1244
      %v1324 = vsub.f32 %v1120, %v1247
      %v1325 = vsub.f32 %v1122, %v1247
      %v1326 = vsub.f32 %v1126, %v1250
      %v1327 = vsub.f32 %v1128, %v1250
      %v1328 = vsub.f32 %v1130, %v1253
      %v1329 = vsub.f32 %v1132, %v1253
      %v1330 = vsub.f32 %v1136, %v1256
      %v1331 = vsub.f32 %v1138, %v1256
      %v1332 = vsub.f32 %v1140, %v1259
      %v1333 = vsub.f32 %v1142, %v1259
      %v1334 = vsub.f32 %v1146, %v1262
      %v1335 = vsub.f32 %v1148, %v1262
      %v1336 = vsub.f32 %v1150, %v1265
      %v1337 = vsub.f32 %v1152, %v1265
      %v1338 = vsub.f32 %v1156, %v1268
      %v1339 = vsub.f32 %v1158, %v1268
      %v1340 = vsub.f32 %v1160, %v1271
      %v1341 = vsub.f32 %v1162, %v1271
      %v1342 = vsub.f32 %v1166, %v1274
      %v1343 = vsub.f32 %v1168, %v1274
      %v1344 = vsub.f32 %v1170, %v1277
      %v1345 = vsub.f32 %v1172, %v1277
      %v1346 = vsub.f32 %v1176, %v1280
      %v1347 = vsub.f32 %v1178, %v1280
      %v1348 = vsub.f32 %v1180, %v1283
      %v1349 = vsub.f32 %v1182, %v1283
      %v1350 = vsub.f32 %v1186, %v1286
      %v1351 = vsub.f32 %v1188, %v1286
      %v1352 = vsub.f32 %v1190, %v1289
      %v1353 = vsub.f32 %v1192, %v1289
      %v1354 = vmul.f32 %v1290, 1.442695
      %v1355 = vpow.pop %v1354
      %v1356 = vmul.f32 %v1291, 1.442695
      %v1357 = vpow.pop %v1356
      %v1358 = vmul.f32 %v1292, 1.442695
      %v1359 = vpow.pop %v1358
      %v1360 = vmul.f32 %v1293, 1.442695
      %v1361 = vpow.pop %v1360
      %v1362 = vmul.f32 %v1294, 1.442695
      %v1363 = vpow.pop %v1362
      %v1364 = vmul.f32 %v1295, 1.442695
      %v1365 = vpow.pop %v1364
      %v1366 = vmul.f32 %v1296, 1.442695
      %v1367 = vpow.pop %v1366
      %v1368 = vmul.f32 %v1297, 1.442695
      %v1369 = vpow.pop %v1368
      %v1370 = vmul.f32 %v1298, 1.442695
      %v1371 = vpow.pop %v1370
      %v1372 = vmul.f32 %v1299, 1.442695
      %v1373 = vpow.pop %v1372
      %v1374 = vmul.f32 %v1300, 1.442695
      %v1375 = vpow.pop %v1374
      %v1376 = vmul.f32 %v1301, 1.442695
      %v1377 = vpow.pop %v1376
      %v1378 = vmul.f32 %v1302, 1.442695
      %v1379 = vpow.pop %v1378
      %v1380 = vmul.f32 %v1303, 1.442695
      %v1381 = vpow.pop %v1380
      %v1382 = vmul.f32 %v1304, 1.442695
      %v1383 = vpow.pop %v1382
      %v1384 = vmul.f32 %v1305, 1.442695
      %v1385 = vpow.pop %v1384
      %v1386 = vmul.f32 %v1306, 1.442695
      %v1387 = vpow.pop %v1386
      %v1388 = vmul.f32 %v1307, 1.442695
      %v1389 = vpow.pop %v1388
      %v1390 = vmul.f32 %v1308, 1.442695
      %v1391 = vpow.pop %v1390
      %v1392 = vmul.f32 %v1309, 1.442695
      %v1393 = vpow.pop %v1392
      %v1394 = vmul.f32 %v1310, 1.442695
      %v1395 = vpow.pop %v1394
      %v1396 = vmul.f32 %v1311, 1.442695
      %v1397 = vpow.pop %v1396
      %v1398 = vmul.f32 %v1312, 1.442695
      %v1399 = vpow.pop %v1398
      %v1400 = vmul.f32 %v1313, 1.442695
      %v1401 = vpow.pop %v1400
      %v1402 = vmul.f32 %v1314, 1.442695
      %v1403 = vpow.pop %v1402
      %v1404 = vmul.f32 %v1315, 1.442695
      %v1405 = vpow.pop %v1404
      %v1406 = vmul.f32 %v1316, 1.442695
      %v1407 = vpow.pop %v1406
      %v1408 = vmul.f32 %v1317, 1.442695
      %v1409 = vpow.pop %v1408
      %v1410 = vmul.f32 %v1318, 1.442695
      %v1411 = vpow.pop %v1410
      %v1412 = vmul.f32 %v1319, 1.442695
      %v1413 = vpow.pop %v1412
      %v1414 = vmul.f32 %v1320, 1.442695
      %v1415 = vpow.pop %v1414
      %v1416 = vmul.f32 %v1321, 1.442695
      %v1417 = vpow.pop %v1416
      %v1418 = vmul.f32 %v1322, 1.442695
      %v1419 = vpow.pop %v1418
      %v1420 = vmul.f32 %v1323, 1.442695
      %v1421 = vpow.pop %v1420
      %v1422 = vmul.f32 %v1324, 1.442695
      %v1423 = vpow.pop %v1422
      %v1424 = vmul.f32 %v1325, 1.442695
      %v1425 = vpow.pop %v1424
      %v1426 = vmul.f32 %v1326, 1.442695
      %v1427 = vpow.pop %v1426
      %v1428 = vmul.f32 %v1327, 1.442695
      %v1429 = vpow.pop %v1428
      %v1430 = vmul.f32 %v1328, 1.442695
      %v1431 = vpow.pop %v1430
      %v1432 = vmul.f32 %v1329, 1.442695
      %v1433 = vpow.pop %v1432
      %v1434 = vmul.f32 %v1330, 1.442695
      %v1435 = vpow.pop %v1434
      %v1436 = vmul.f32 %v1331, 1.442695
      %v1437 = vpow.pop %v1436
      %v1438 = vmul.f32 %v1332, 1.442695
      %v1439 = vpow.pop %v1438
      %v1440 = vmul.f32 %v1333, 1.442695
      %v1441 = vpow.pop %v1440
      %v1442 = vmul.f32 %v1334, 1.442695
      %v1443 = vpow.pop %v1442
      %v1444 = vmul.f32 %v1335, 1.442695
      %v1445 = vpow.pop %v1444
      %v1446 = vmul.f32 %v1336, 1.442695
      %v1447 = vpow.pop %v1446
      %v1448 = vmul.f32 %v1337, 1.442695
      %v1449 = vpow.pop %v1448
      %v1450 = vmul.f32 %v1338, 1.442695
      %v1451 = vpow.pop %v1450
      %v1452 = vmul.f32 %v1339, 1.442695
      %v1453 = vpow.pop %v1452
      %v1454 = vmul.f32 %v1340, 1.442695
      %v1455 = vpow.pop %v1454
      %v1456 = vmul.f32 %v1341, 1.442695
      %v1457 = vpow.pop %v1456
      %v1458 = vmul.f32 %v1342, 1.442695
      %v1459 = vpow.pop %v1458
      %v1460 = vmul.f32 %v1343, 1.442695
      %v1461 = vpow.pop %v1460
      %v1462 = vmul.f32 %v1344, 1.442695
      %v1463 = vpow.pop %v1462
      %v1464 = vmul.f32 %v1345, 1.442695
      %v1465 = vpow.pop %v1464
      %v1466 = vmul.f32 %v1346, 1.442695
      %v1467 = vpow.pop %v1466
      %v1468 = vmul.f32 %v1347, 1.442695
      %v1469 = vpow.pop %v1468
      %v1470 = vmul.f32 %v1348, 1.442695
      %v1471 = vpow.pop %v1470
      %v1472 = vmul.f32 %v1349, 1.442695
      %v1473 = vpow.pop %v1472
      %v1474 = vmul.f32 %v1350, 1.442695
      %v1475 = vpow.pop %v1474
      %v1476 = vmul.f32 %v1351, 1.442695
      %v1477 = vpow.pop %v1476
      %v1478 = vmul.f32 %v1352, 1.442695
      %v1479 = vpow.pop %v1478
      %v1480 = vmul.f32 %v1353, 1.442695
      %v1481 = vpow.pop %v1480
      %v1482 = vpack.c.bf16 %v1359, %v1355
      %v1483 = vpack.c.bf16 %v1361, %v1357
      %v1484 = vpack.c.bf16 %v1367, %v1363
      %v1485 = vpack.c.bf16 %v1369, %v1365
      %v1486 = vpack.c.bf16 %v1375, %v1371
      %v1487 = vpack.c.bf16 %v1377, %v1373
      %v1488 = vpack.c.bf16 %v1383, %v1379
      %v1489 = vpack.c.bf16 %v1385, %v1381
      %v1490 = vpack.c.bf16 %v1391, %v1387
      %v1491 = vpack.c.bf16 %v1393, %v1389
      %v1492 = vpack.c.bf16 %v1399, %v1395
      %v1493 = vpack.c.bf16 %v1401, %v1397
      %v1494 = vpack.c.bf16 %v1407, %v1403
      %v1495 = vpack.c.bf16 %v1409, %v1405
      %v1496 = vpack.c.bf16 %v1415, %v1411
      %v1497 = vpack.c.bf16 %v1417, %v1413
      %v1498 = vpack.c.bf16 %v1423, %v1419
      %v1499 = vpack.c.bf16 %v1425, %v1421
      %v1500 = vpack.c.bf16 %v1431, %v1427
      %v1501 = vpack.c.bf16 %v1433, %v1429
      %v1502 = vpack.c.bf16 %v1439, %v1435
      %v1503 = vpack.c.bf16 %v1441, %v1437
      %v1504 = vpack.c.bf16 %v1447, %v1443
      %v1505 = vpack.c.bf16 %v1449, %v1445
      %v1506 = vpack.c.bf16 %v1455, %v1451
      %v1507 = vpack.c.bf16 %v1457, %v1453
      %v1508 = vpack.c.bf16 %v1463, %v1459
      %v1509 = vpack.c.bf16 %v1465, %v1461
      %v1510 = vpack.c.bf16 %v1471, %v1467
      %v1511 = vpack.c.bf16 %v1473, %v1469
      %v1512 = vpack.c.bf16 %v1479, %v1475
      %v1513 = vpack.c.bf16 %v1481, %v1477
      %v1514 = vpack.c.bf16 %v855, %v851
      %v1515 = vpack.c.bf16 %v857, %v853
      %v1516 = vpack.c.bf16 %v865, %v861
      %v1517 = vpack.c.bf16 %v867, %v863
      %1518 = vmatprep.subr.bf16.mxu0 %v1483
      %1519 = vmatpush1.bf16.xpose.msra.mxu0 %v1482
      %1520 = vmatprep.subr.bf16.mxu0 %v1485
      %1521 = vmatpush1.bf16.xpose.msra.mxu0 %v1484
      %1522 = vmatprep.subr.bf16.mxu0 %v1487
      %1523 = vmatpush1.bf16.xpose.msra.mxu0 %v1486
      %1524 = vmatprep.subr.bf16.mxu0 %v1489
      %1525 = vmatpush1.bf16.xpose.msra.mxu0 %v1488
      %1526 = vmatprep.subr.bf16.mxu0 %v1491
      %1527 = vmatpush1.bf16.xpose.msra.mxu0 %v1490
      %1528 = vmatprep.subr.bf16.mxu0 %v1493
      %1529 = vmatpush1.bf16.xpose.msra.mxu0 %v1492
      %1530 = vmatprep.subr.bf16.mxu0 %v1495
      %1531 = vmatpush1.bf16.xpose.msra.mxu0 %v1494
      %1532 = vmatprep.subr.bf16.mxu0 %v1497
      %1533 = vmatpush1.bf16.xpose.msra.mxu0 %v1496
      %1534 = vmatprep.subr.bf16.mxu0 %v1499
      %1535 = vmatpush1.bf16.xpose.msra.mxu0 %v1498
      %1536 = vmatprep.subr.bf16.mxu0 %v1501
      %1537 = vmatpush1.bf16.xpose.msra.mxu0 %v1500
      %1538 = vmatprep.subr.bf16.mxu0 %v1503
      %1539 = vmatpush1.bf16.xpose.msra.mxu0 %v1502
      %1540 = vmatprep.subr.bf16.mxu0 %v1505
      %1541 = vmatpush1.bf16.xpose.msra.mxu0 %v1504
      %1542 = vmatprep.subr.bf16.mxu0 %v1507
      %1543 = vmatpush1.bf16.xpose.msra.mxu0 %v1506
      %1544 = vmatprep.subr.bf16.mxu0 %v1509
      %1545 = vmatpush1.bf16.xpose.msra.mxu0 %v1508
      %1546 = vmatprep.subr.bf16.mxu0 %v1511
      %1547 = vmatpush1.bf16.xpose.msra.mxu0 %v1510
      %1548 = vmatprep.subr.bf16.mxu0 %v1513
      %1549 = vmatpush1.bf16.xpose.msra.mxu0 %v1512
      %1550 = vmatprep.mubr.bf16.mxu0 %v1515
      %1551 = vmatmul.mubr.bf16.gmra.mrb[0].mxu0 %v1514
      %v1552 = vpop.f32.mrb[0].mxu0
      %v1553 = vadd.f32 0.0, %v1552
      %v1554 = vpop.f32.mrb[0].mxu0
      %v1555 = vadd.f32 0.0, %v1554
      %v1556 = vpop.f32.mrb[0].mxu0
      %v1557 = vadd.f32 0.0, %v1556
      %v1558 = vpop.f32.mrb[0].mxu0
      %v1559 = vadd.f32 0.0, %v1558
      %1560 = vmatprep.mubr.bf16.mxu0 %v1517
      %1561 = vmatmul.mubr.bf16.gmra.mrb[0].mxu0 %v1516
      %v1562 = vpop.f32.mrb[0].mxu0
      %v1563 = vadd.f32 0.0, %v1562
      %v1564 = vpop.f32.mrb[0].mxu0
      %v1565 = vadd.f32 0.0, %v1564
      %v1566 = vpop.f32.mrb[0].mxu0
      %v1567 = vadd.f32 0.0, %v1566
      %v1568 = vpop.f32.mrb[0].mxu0
      %v1569 = vadd.f32 0.0, %v1568
      %1570 = vdwg.mxu0
      %1571 = vmatprep.subr.bf16.mxu0 %v1483
      %1572 = vmatpush1.bf16.xpose.msra.mxu0 %v1482
      %1573 = vmatprep.subr.bf16.mxu0 %v1485
      %1574 = vmatpush1.bf16.xpose.msra.mxu0 %v1484
      %1575 = vmatprep.subr.bf16.mxu0 %v1487
      %1576 = vmatpush1.bf16.xpose.msra.mxu0 %v1486
      %1577 = vmatprep.subr.bf16.mxu0 %v1489
      %1578 = vmatpush1.bf16.xpose.msra.mxu0 %v1488
      %1579 = vmatprep.subr.bf16.mxu0 %v1491
      %1580 = vmatpush1.bf16.xpose.msra.mxu0 %v1490
      %1581 = vmatprep.subr.bf16.mxu0 %v1493
      %1582 = vmatpush1.bf16.xpose.msra.mxu0 %v1492
      %1583 = vmatprep.subr.bf16.mxu0 %v1495
      %1584 = vmatpush1.bf16.xpose.msra.mxu0 %v1494
      %1585 = vmatprep.subr.bf16.mxu0 %v1497
      %1586 = vmatpush1.bf16.xpose.msra.mxu0 %v1496
      %1587 = vmatprep.subr.bf16.mxu0 %v1499
      %1588 = vmatpush1.bf16.xpose.msra.mxu0 %v1498
      %1589 = vmatprep.subr.bf16.mxu0 %v1501
      %1590 = vmatpush1.bf16.xpose.msra.mxu0 %v1500
      %1591 = vmatprep.subr.bf16.mxu0 %v1503
      %1592 = vmatpush1.bf16.xpose.msra.mxu0 %v1502
      %1593 = vmatprep.subr.bf16.mxu0 %v1505
      %1594 = vmatpush1.bf16.xpose.msra.mxu0 %v1504
      %1595 = vmatprep.subr.bf16.mxu0 %v1507
      %1596 = vmatpush1.bf16.xpose.msra.mxu0 %v1506
      %1597 = vmatprep.subr.bf16.mxu0 %v1509
      %1598 = vmatpush1.bf16.xpose.msra.mxu0 %v1508
      %1599 = vmatprep.subr.bf16.mxu0 %v1511
      %1600 = vmatpush1.bf16.xpose.msra.mxu0 %v1510
      %1601 = vmatprep.subr.bf16.mxu0 %v1513
      %1602 = vmatpush1.bf16.xpose.msra.mxu0 %v1512
      %1603 = vmatprep.mubr.bf16.mxu0 1065369472
      %1604 = vmatmul.mubr.bf16.gmra.mrb[0].mxu0 1065369472
      %v1605 = vpop.f32.mrb[0].mxu0
      %v1606 = vadd.f32 0.0, %v1605
      %v1607 = vpop.f32.mrb[0].mxu0
      %v1608 = vadd.f32 0.0, %v1607
      %v1609 = vpop.f32.mrb[0].mxu0
      %v1610 = vpop.f32.mrb[0].mxu0
      %1611 = vdwg.mxu0
      %v1612 = vrcp.pop %v1606
      %v1613 = vrcp.pop %v1608
      %v1614 = vlaneseq
      %v1615 = vshrl.u32 %v1614, 7
      %v1616 = vsub.s32 0, %v1615
      %v1617 = vrot.slane %v1612, %v1616
      %v1618 = vlaneseq
      %v1619 = vshrl.u32 %v1618, 7
      %v1620 = vsub.s32 0, %v1619
      %v1621 = vrot.slane %v1613, %v1620
      %v1622 = vmul.f32 %v1553, %v1617
      %v1623 = vmul.f32 %v1555, %v1621
      %v1624 = vmul.f32 %v1557, %v1617
      %v1625 = vmul.f32 %v1559, %v1621
      %v1626 = vmul.f32 %v1563, %v1617
      %v1627 = vmul.f32 %v1565, %v1621
      %v1628 = vmul.f32 %v1567, %v1617
      %v1629 = vmul.f32 %v1569, %v1621
      %v1630 = vld [vmem:[%s6] sm:$0xff]
      %v1631 = vld [vmem:[%s6 + $0x8] sm:$0xff]
      %v1632 = vld [vmem:[%s6 + $0x10] sm:$0xff]
      %v1633 = vld [vmem:[%s6 + $0x18] sm:$0xff]
      %1635 = vset.pattern.permute.xlu0 0
      %1636 = vperm.xlu0 %1635, %v1630
      %v1637 = vpop.permute.xlu0 %1636
      %1640 = vset.pattern.permute.xlu0 0
      %1641 = vperm.xlu0 %1640, %v1631
      %v1642 = vpop.permute.xlu0 %1641
      %1645 = vset.pattern.permute.xlu0 0
      %1646 = vperm.xlu0 %1645, %v1632
      %v1647 = vpop.permute.xlu0 %1646
      %1650 = vset.pattern.permute.xlu0 0
      %1651 = vperm.xlu0 %1650, %v1633
      %v1652 = vpop.permute.xlu0 %1651
      %v1654 = vadd.f32 %v1622, %v1637
      %v1655 = vadd.f32 %v1623, %v1637
      %v1656 = vadd.f32 %v1624, %v1642
      %v1657 = vadd.f32 %v1625, %v1642
      %v1658 = vadd.f32 %v1626, %v1647
      %v1659 = vadd.f32 %v1627, %v1647
      %v1660 = vadd.f32 %v1628, %v1652
      %v1661 = vadd.f32 %v1629, %v1652
      %v1662 = vadd.f32 %v281, %v1654
      %v1663 = vadd.f32 %v282, %v1655
      %v1664 = vadd.f32 %v283, %v1656
      %v1665 = vadd.f32 %v284, %v1657
      %v1666 = vadd.f32 %v285, %v1658
      %v1667 = vadd.f32 %v286, %v1659
      %v1668 = vadd.f32 %v287, %v1660
      %v1669 = vadd.f32 %v288, %v1661
      %1670 = vst [vmem:[%s278] sm:$0xff] %v1662
      %1671 = vst [vmem:[%s278 + $0x8] sm:$0xff] %v1663
      %1672 = vst [vmem:[%s278 + $0x10] sm:$0xff] %v1664
      %1673 = vst [vmem:[%s278 + $0x18] sm:$0xff] %v1665
      %1674 = vst [vmem:[%s278 + $0x20] sm:$0xff] %v1666
      %1675 = vst [vmem:[%s278 + $0x28] sm:$0xff] %v1667
      %1676 = vst [vmem:[%s278 + $0x30] sm:$0xff] %v1668
      %1677 = vst [vmem:[%s278 + $0x38] sm:$0xff] %v1669
      %p1678 = scmp.lt.s32.totalorder %s18, 1
      %s1679 = scalar_select %p1678, %s18, 1
      %s1680 = smul.addr %s1679, 8
      %s1681 = smul.addr %s1680, 8
      %s1682 = scalar_lea.vmem %s7, %s1681
      // Predicated region
      $region49: #{attention_block_pallas.1} parent=47 // pred_check
        %p1683 = pneg %p188
      $region50: #{attention_block_pallas.1} parent=47 // pred_check_branch
        %1685 = sbr.rel (%p1683) target = $region52
      $region51: #{attention_block_pallas.1} parent=47 // pred_region
        _
      $region52: #{attention_block_pallas.1} parent=47 // pred_fallthru
        _
    $region48: #{attention_block_pallas.1} parent=5 // pred_fallthru
      _
    %p1686 = scmp.le.s32.totalorder 2, %s13
    // Predicated region
    $region53: #{attention_block_pallas.1} parent=5 // pred_check
      %p1687 = pneg %p1686
    $region54: #{attention_block_pallas.1} parent=5 // pred_check_branch
      %1689 = sbr.rel (%p1687) target = $region56
    $region55: #{attention_block_pallas.1} parent=5 // pred_region
      %s1690 = ssub.s32 %s13, 2
      // Predicated region
      $region57: #{attention_block_pallas.1} parent=55 // pred_check
        %p1691 = pneg %p194
      $region58: #{attention_block_pallas.1} parent=55 // pred_check_branch
        %1693 = sbr.rel (%p1691) target = $region60
      $region59: #{attention_block_pallas.1} parent=55 // pred_region
        %p1694 = scmp.lt.s32.totalorder %s19, 1
        %s1695 = scalar_select %p1694, %s19, 1
        %s1696 = smul.addr %s1695, 8
        %s1697 = smul.addr %s1696, 8
        %s1698 = scalar_lea.vmem %s7, %s1697
      $region60: #{attention_block_pallas.1} parent=55 // pred_fallthru
        _
    $region56: #{attention_block_pallas.1} parent=5 // pred_fallthru
      _
  $region6: #{attention_block_pallas.1} parent=0 // loop_footer
    %s17 = sadd.s32 1, %s13
  $region7: #{attention_block_pallas.1} parent=0 // loop_footer_branch
    %12 = sbr.rel target = $region3
  $region8: #{attention_block_pallas.1} parent=0 // loop_exit
    _

</llo_original>
